<compile_context>
chip_gen: v5e
topology: v5e:2x2
jax: 0.10.0
libtpu: 0.0.40
codegen_flags: <defaults>
</compile_context>

<pallas_src>
import jax
import jax.numpy as jnp
from jax.experimental import pallas as pl
from jax.experimental.pallas import tpu as pltpu

BN_EPS = 1e-5


def _round_up(x, m):
    return (x + m - 1) // m * m


def _pick_tile_rows(H):
    # 8 rows keeps the per-step working set small enough for v7x while giving
    # M = TH*W in MXU-friendly multiples for typical UNet widths; larger TH
    # amortizes per-step overhead better on v5e/v6e (128 MiB VMEM).
    for th in (8, 16, 4, 2, 1):
        if H % th == 0:
            return th
    return H


def _patches_3x3(x, out_rows):
    """im2col for a 3x3 'SAME' conv.

    x: (out_rows + 2, W, C) bf16; rows already include the +/-1 row halo
       (off-image halo rows must already be zero).
    Returns (out_rows * W, 9 * C) with K ordered (dy, dx, c), matching
    w.reshape(9 * C, Cout) for HWIO weights (3, 3, C, Cout).
    """
    rows, W, C = x.shape
    if W > 1:
        zcol = jnp.zeros((rows, 1, C), x.dtype)
        x_m1 = jnp.concatenate([zcol, x[:, :W - 1, :]], axis=1)   # x[..., w-1, :]
        x_p1 = jnp.concatenate([x[:, 1:, :], zcol], axis=1)       # x[..., w+1, :]
    else:
        x_m1 = jnp.zeros_like(x)
        x_p1 = jnp.zeros_like(x)
    shifted = (x_m1, x, x_p1)                                     # dx = 0, 1, 2
    taps = []
    for dy in range(3):
        for dx in range(3):
            taps.append(shifted[dx][dy:dy + out_rows])
    return jnp.concatenate(taps, axis=-1).reshape(out_rows * W, 9 * C)


def double_conv_nhwc(x_nhwc, w1, s1, b1, w2, s2, b2):
    """x_nhwc: (N,H,W,Cin) f32 -> (N,H,W,Cout) bf16, fused DoubleConv (eval BN)."""
    N, H, W, Cin = x_nhwc.shape
    Cmid, Cout = w1.shape[-1], w2.shape[-1]

    CinP = _round_up(max(Cin, 8), 8)      # kept narrow: K = 9*CinP feeds the MXU
    CmidP = _round_up(Cmid, 128)          # lane-dense mid / full MXU N dim
    CoutP = _round_up(Cout, 128)          # lane-dense output store

    TH = _pick_tile_rows(H)
    nt = H // TH

    # Channel padding only (spatial halo handled in-kernel, no jnp.pad on H/W).
    xp = jnp.pad(x_nhwc.astype(jnp.bfloat16),
                 ((0, 0), (0, 0), (0, 0), (0, CinP - Cin)))

    def pad_w(w, cip, cop):
        kh, kw, ci, co = w.shape
        wp = jnp.zeros((kh, kw, cip, cop), jnp.bfloat16)
        wp = wp.at[:, :, :ci, :co].set(w.astype(jnp.bfloat16))
        return wp.reshape(kh * kw * cip, cop)

    def pad_v(v, cp):
        return jnp.zeros((1, cp), jnp.float32).at[0, :v.shape[0]].set(
            v.astype(jnp.float32))

    w1m, w2m = pad_w(w1, CinP, CmidP), pad_w(w2, CmidP, CoutP)
    s1p, b1p = pad_v(s1, CmidP), pad_v(b1, CmidP)
    s2p, b2p = pad_v(s2, CoutP), pad_v(b2, CoutP)

    def kernel(xb_ref, xt0_ref, xt1_ref, xb0_ref, xb1_ref,
               w1_ref, s1_ref, b1_ref, w2_ref, s2_ref, b2_ref, o_ref):
        t = pl.program_id(1)
        bf = jnp.bfloat16

        # Assemble TH+4 input rows (2-row halo per side; off-image rows -> 0).
        v_t0 = (t * TH - 2 >= 0).astype(bf)
        v_t1 = (t * TH - 1 >= 0).astype(bf)
        v_b0 = ((t + 1) * TH <= H - 1).astype(bf)
        v_b1 = ((t + 1) * TH + 1 <= H - 1).astype(bf)
        xt = jnp.concatenate([
            xt0_ref[0] * v_t0, xt1_ref[0] * v_t1, xb_ref[0],
            xb0_ref[0] * v_b0, xb1_ref[0] * v_b1], axis=0)        # (TH+4, W, CinP)

        # Layer 1: im2col matmul (K = 9*CinP) + folded BN + ReLU -> bf16 mid.
        p1 = _patches_3x3(xt, TH + 2)                             # ((TH+2)*W, 9*CinP)
        y1 = jnp.dot(p1, w1_ref[...], preferred_element_type=jnp.float32)
        y1 = jnp.maximum(y1 * s1_ref[...] + b1_ref[...], 0.0)
        mid = y1.astype(bf).reshape(TH + 2, W, CmidP)

        # Zero the +/-1 mid halo rows that fall outside the image: layer-2
        # "SAME" padding must see zeros there, not extrapolated conv values.
        rid = jax.lax.broadcasted_iota(jnp.int32, (TH + 2, 1, 1), 0)
        keep = ((rid != 0) | (t * TH - 1 >= 0)) & \
               ((rid != TH + 1) | ((t + 1) * TH <= H - 1))
        mid = mid * keep.astype(bf)

        # Layer 2: im2col matmul (K = 9*CmidP) + folded BN + ReLU -> bf16 out.
        p2 = _patches_3x3(mid, TH)                                # (TH*W, 9*CmidP)
        y2 = jnp.dot(p2, w2_ref[...], preferred_element_type=jnp.float32)
        y2 = jnp.maximum(y2 * s2_ref[...] + b2_ref[...], 0.0)
        o_ref[0, 0] = y2.astype(o_ref.dtype)                      # lane-dense store

    body_spec = pl.BlockSpec((1, TH, W, CinP), lambda n, t: (n, t, 0, 0))

    def make_row_spec(off):
        # Single-row halo fetch; clamp at the image edge (masked to 0 in-kernel).
        return pl.BlockSpec(
            (1, 1, W, CinP),
            lambda n, t: (n, jnp.clip(t * TH + off, 0, H - 1), 0, 0))

    def const2(n, t):
        return (0, 0)

    out = pl.pallas_call(
        kernel,
        out_shape=jax.ShapeDtypeStruct((N, nt, TH * W, CoutP), jnp.bfloat16),
        grid=(N, nt),
        in_specs=[
            body_spec,
            make_row_spec(-2), make_row_spec(-1),
            make_row_spec(TH), make_row_spec(TH + 1),
            pl.BlockSpec((9 * CinP, CmidP), const2),
            pl.BlockSpec((1, CmidP), const2),
            pl.BlockSpec((1, CmidP), const2),
            pl.BlockSpec((9 * CmidP, CoutP), const2),
            pl.BlockSpec((1, CoutP), const2),
            pl.BlockSpec((1, CoutP), const2),
        ],
        out_specs=pl.BlockSpec((1, 1, TH * W, CoutP), lambda n, t: (n, t, 0, 0)),
        compiler_params=pltpu.CompilerParams(
            dimension_semantics=("parallel", "parallel"),
            vmem_limit_bytes=48 * 1024 * 1024),
    )(xp, xp, xp, xp, xp, w1m, s1p, b1p, w2m, s2p, b2p)

    return out.reshape(N, H, W, CoutP)[..., :Cout]


def init_double_conv_params(key, in_channels, out_channels, mid_channels=None):
    if not mid_channels:
        mid_channels = out_channels
    ks = jax.random.split(key, 8)

    def conv_block(kw, kb, kg, kbeta, cin, cout):
        w = jax.random.normal(kw, (3, 3, cin, cout), jnp.float32) * 0.1   # HWIO
        conv_b = jax.random.normal(kb, (cout,), jnp.float32) * 0.05
        gamma = jax.random.uniform(kg, (cout,), jnp.float32, 0.5, 1.5)
        beta = jax.random.normal(kbeta, (cout,), jnp.float32) * 0.1
        running_mean = jnp.zeros((cout,), jnp.float32)
        running_var = jnp.ones((cout,), jnp.float32)
        scale = gamma / jnp.sqrt(running_var + BN_EPS)
        bias = beta - running_mean * scale + conv_b * scale
        return dict(w=w, scale=scale, bias=bias,
                    conv_b=conv_b, gamma=gamma, beta=beta)

    p1 = conv_block(ks[0], ks[1], ks[2], ks[3], in_channels, mid_channels)
    p2 = conv_block(ks[4], ks[5], ks[6], ks[7], mid_channels, out_channels)
    return p1, p2


@jax.jit
def double_conv_forward(x_nchw, p1_w, p1_s, p1_b, p2_w, p2_s, p2_b):
    """Matches DoubleConv.forward on NCHW input (inference-mode BN).

    The NCHW<->NHWC transposes + final f32 cast are only for interface parity
    with the PyTorch module; keep NHWC/bf16 end-to-end in a real pipeline.
    """
    x = jnp.transpose(x_nchw, (0, 2, 3, 1))                     # NCHW -> NHWC
    y = double_conv_nhwc(x, p1_w, p1_s, p1_b, p2_w, p2_s, p2_b)
    return jnp.transpose(y, (0, 3, 1, 2)).astype(jnp.float32)   # NHWC -> NCHW


def _ref_block(x_nhwc, w, conv_b, gamma, beta):
    # Reference mirrors the kernel numerics: bf16 matmul operands, f32 accum.
    y = jax.lax.conv_general_dilated(
        x_nhwc.astype(jnp.bfloat16), w.astype(jnp.bfloat16), (1, 1), "SAME",
        dimension_numbers=("NHWC", "HWIO", "NHWC"),
        preferred_element_type=jnp.float32) + conv_b
    y = gamma * y / jnp.sqrt(1.0 + BN_EPS) + beta               # BN eval (mean=0, var=1)
    return jnp.maximum(y, 0.0)


if __name__ == "__main__":
    key = jax.random.PRNGKey(0)
    kx, kp = jax.random.split(key)

    N, Cin, H, W = 2, 4, 16, 16
    Cout = 8
    x = jax.random.normal(kx, (N, Cin, H, W), jnp.float32)

    p1, p2 = init_double_conv_params(kp, Cin, Cout)

    out = double_conv_forward(x, p1["w"], p1["scale"], p1["bias"],
                              p2["w"], p2["scale"], p2["bias"])
    out = jax.block_until_ready(out)
    assert out.shape == (N, Cout, H, W), out.shape

    # Pure-JAX reference (same bf16 operands / f32 accumulation / bf16 output).
    x_nhwc = jnp.transpose(x, (0, 2, 3, 1))
    r = _ref_block(x_nhwc, p1["w"], p1["conv_b"], p1["gamma"], p1["beta"])
    r = _ref_block(r, p2["w"], p2["conv_b"], p2["gamma"], p2["beta"])
    ref = jnp.transpose(r.astype(jnp.bfloat16).astype(jnp.float32), (0, 3, 1, 2))
    err = float(jnp.max(jnp.abs(out - ref)))
    assert jnp.allclose(out, ref, atol=2e-2, rtol=2e-2), err

    print("KERNEL_OK")
</pallas_src>

<mosaic_0001>
module attributes {stable_mosaic.version = 11 : i64} {
  func.func @kernel(%arg0: i32, %arg1: i32, %arg2: memref<1x8x16x8xbf16, #tpu.memory_space<vmem>>, %arg3: memref<1x1x16x8xbf16, #tpu.memory_space<vmem>>, %arg4: memref<1x1x16x8xbf16, #tpu.memory_space<vmem>>, %arg5: memref<1x1x16x8xbf16, #tpu.memory_space<vmem>>, %arg6: memref<1x1x16x8xbf16, #tpu.memory_space<vmem>>, %arg7: memref<72x128xbf16, #tpu.memory_space<vmem>>, %arg8: memref<1x128xf32, #tpu.memory_space<vmem>>, %arg9: memref<1x128xf32, #tpu.memory_space<vmem>>, %arg10: memref<1152x128xbf16, #tpu.memory_space<vmem>>, %arg11: memref<1x128xf32, #tpu.memory_space<vmem>>, %arg12: memref<1x128xf32, #tpu.memory_space<vmem>>, %arg13: memref<1x1x128x128xbf16, #tpu.memory_space<vmem>>) attributes {dimension_semantics = [#tpu.dimension_semantics<parallel>, #tpu.dimension_semantics<parallel>], iteration_bounds = array<i64: 2, 2>, scalar_prefetch = 0 : i64, scratch_operands = 0 : i64, tpu.core_type = #tpu.core_type<tc>, window_params = [{transform_indices = @transform_0, window_bounds = array<i64: 1, 8, 16, 8>}, {transform_indices = @transform_1, window_bounds = array<i64: 1, 1, 16, 8>}, {transform_indices = @transform_2, window_bounds = array<i64: 1, 1, 16, 8>}, {transform_indices = @transform_3, window_bounds = array<i64: 1, 1, 16, 8>}, {transform_indices = @transform_4, window_bounds = array<i64: 1, 1, 16, 8>}, {pipeline_mode = #tpu.pipeline_mode<synchronous>, transform_indices = @transform_5, window_bounds = array<i64: 72, 128>}, {pipeline_mode = #tpu.pipeline_mode<synchronous>, transform_indices = @transform_6, window_bounds = array<i64: 1, 128>}, {pipeline_mode = #tpu.pipeline_mode<synchronous>, transform_indices = @transform_7, window_bounds = array<i64: 1, 128>}, {pipeline_mode = #tpu.pipeline_mode<synchronous>, transform_indices = @transform_8, window_bounds = array<i64: 1152, 128>}, {pipeline_mode = #tpu.pipeline_mode<synchronous>, transform_indices = @transform_9, window_bounds = array<i64: 1, 128>}, {pipeline_mode = #tpu.pipeline_mode<synchronous>, transform_indices = @transform_10, window_bounds = array<i64: 1, 128>}, {transform_indices = @transform_11, window_bounds = array<i64: 1, 1, 128, 128>}]} {
    %c8_i32 = arith.constant 8 : i32
    %0 = arith.muli %arg1, %c8_i32 : i32
    %c2_i32 = arith.constant 2 : i32
    %1 = arith.subi %0, %c2_i32 : i32
    %c0_i32 = arith.constant 0 : i32
    %2 = arith.cmpi sge, %1, %c0_i32 : i32
    %3 = arith.extui %2 : i1 to i32
    %4 = arith.sitofp %3 : i32 to f32
    %5 = arith.truncf %4 : f32 to bf16
    %c8_i32_0 = arith.constant 8 : i32
    %6 = arith.muli %arg1, %c8_i32_0 : i32
    %c1_i32 = arith.constant 1 : i32
    %7 = arith.subi %6, %c1_i32 : i32
    %c0_i32_1 = arith.constant 0 : i32
    %8 = arith.cmpi sge, %7, %c0_i32_1 : i32
    %9 = arith.extui %8 : i1 to i32
    %10 = arith.sitofp %9 : i32 to f32
    %11 = arith.truncf %10 : f32 to bf16
    %c1_i32_2 = arith.constant 1 : i32
    %12 = arith.addi %arg1, %c1_i32_2 : i32
    %c8_i32_3 = arith.constant 8 : i32
    %13 = arith.muli %12, %c8_i32_3 : i32
    %c15_i32 = arith.constant 15 : i32
    %14 = arith.cmpi sle, %13, %c15_i32 : i32
    %15 = arith.extui %14 : i1 to i32
    %16 = arith.sitofp %15 : i32 to f32
    %17 = arith.truncf %16 : f32 to bf16
    %c1_i32_4 = arith.constant 1 : i32
    %18 = arith.addi %arg1, %c1_i32_4 : i32
    %c8_i32_5 = arith.constant 8 : i32
    %19 = arith.muli %18, %c8_i32_5 : i32
    %c1_i32_6 = arith.constant 1 : i32
    %20 = arith.addi %19, %c1_i32_6 : i32
    %c15_i32_7 = arith.constant 15 : i32
    %21 = arith.cmpi sle, %20, %c15_i32_7 : i32
    %22 = arith.extui %21 : i1 to i32
    %23 = arith.sitofp %22 : i32 to f32
    %24 = arith.truncf %23 : f32 to bf16
    %c0 = arith.constant 0 : index
    %c0_8 = arith.constant 0 : index
    %c0_9 = arith.constant 0 : index
    %c0_10 = arith.constant 0 : index
    %25 = vector.load %arg3[%c0, %c0_8, %c0_9, %c0_10] : memref<1x1x16x8xbf16, #tpu.memory_space<vmem>>, vector<1x1x16x8xbf16>
    %26 = vector.shape_cast %25 : vector<1x1x16x8xbf16> to vector<1x16x8xbf16>
    %27 = vector.broadcast %5 : bf16 to vector<1x16x8xbf16>
    %28 = arith.mulf %26, %27 : vector<1x16x8xbf16>
    %c0_11 = arith.constant 0 : index
    %c0_12 = arith.constant 0 : index
    %c0_13 = arith.constant 0 : index
    %c0_14 = arith.constant 0 : index
    %29 = vector.load %arg4[%c0_11, %c0_12, %c0_13, %c0_14] : memref<1x1x16x8xbf16, #tpu.memory_space<vmem>>, vector<1x1x16x8xbf16>
    %30 = vector.shape_cast %29 : vector<1x1x16x8xbf16> to vector<1x16x8xbf16>
    %31 = vector.broadcast %11 : bf16 to vector<1x16x8xbf16>
    %32 = arith.mulf %30, %31 : vector<1x16x8xbf16>
    %c0_15 = arith.constant 0 : index
    %c0_16 = arith.constant 0 : index
    %c0_17 = arith.constant 0 : index
    %c0_18 = arith.constant 0 : index
    %33 = vector.load %arg2[%c0_15, %c0_16, %c0_17, %c0_18] : memref<1x8x16x8xbf16, #tpu.memory_space<vmem>>, vector<1x8x16x8xbf16>
    %34 = vector.shape_cast %33 : vector<1x8x16x8xbf16> to vector<8x16x8xbf16>
    %c0_19 = arith.constant 0 : index
    %c0_20 = arith.constant 0 : index
    %c0_21 = arith.constant 0 : index
    %c0_22 = arith.constant 0 : index
    %35 = vector.load %arg5[%c0_19, %c0_20, %c0_21, %c0_22] : memref<1x1x16x8xbf16, #tpu.memory_space<vmem>>, vector<1x1x16x8xbf16>
    %36 = vector.shape_cast %35 : vector<1x1x16x8xbf16> to vector<1x16x8xbf16>
    %37 = vector.broadcast %17 : bf16 to vector<1x16x8xbf16>
    %38 = arith.mulf %36, %37 : vector<1x16x8xbf16>
    %c0_23 = arith.constant 0 : index
    %c0_24 = arith.constant 0 : index
    %c0_25 = arith.constant 0 : index
    %c0_26 = arith.constant 0 : index
    %39 = vector.load %arg6[%c0_23, %c0_24, %c0_25, %c0_26] : memref<1x1x16x8xbf16, #tpu.memory_space<vmem>>, vector<1x1x16x8xbf16>
    %40 = vector.shape_cast %39 : vector<1x1x16x8xbf16> to vector<1x16x8xbf16>
    %41 = vector.broadcast %24 : bf16 to vector<1x16x8xbf16>
    %42 = arith.mulf %40, %41 : vector<1x16x8xbf16>
    %43 = tpu.concatenate %28, %32, %34, %38, %42 in 0 : vector<1x16x8xbf16>, vector<1x16x8xbf16>, vector<8x16x8xbf16>, vector<1x16x8xbf16>, vector<1x16x8xbf16> -> vector<12x16x8xbf16>
    %cst = arith.constant 0.000000e+00 : bf16
    %44 = vector.broadcast %cst : bf16 to vector<12x1x8xbf16>
    %45 = vector.extract_strided_slice %43 {offsets = [0, 0, 0], sizes = [12, 15, 8], strides = [1, 1, 1]} : vector<12x16x8xbf16> to vector<12x15x8xbf16>
    %46 = tpu.concatenate %44, %45 in 1 : vector<12x1x8xbf16>, vector<12x15x8xbf16> -> vector<12x16x8xbf16>
    %47 = vector.extract_strided_slice %43 {offsets = [0, 1, 0], sizes = [12, 15, 8], strides = [1, 1, 1]} : vector<12x16x8xbf16> to vector<12x15x8xbf16>
    %48 = tpu.concatenate %47, %44 in 1 : vector<12x15x8xbf16>, vector<12x1x8xbf16> -> vector<12x16x8xbf16>
    %49 = vector.extract_strided_slice %46 {offsets = [0, 0, 0], sizes = [10, 16, 8], strides = [1, 1, 1]} : vector<12x16x8xbf16> to vector<10x16x8xbf16>
    %50 = vector.extract_strided_slice %43 {offsets = [0, 0, 0], sizes = [10, 16, 8], strides = [1, 1, 1]} : vector<12x16x8xbf16> to vector<10x16x8xbf16>
    %51 = vector.extract_strided_slice %48 {offsets = [0, 0, 0], sizes = [10, 16, 8], strides = [1, 1, 1]} : vector<12x16x8xbf16> to vector<10x16x8xbf16>
    %52 = vector.extract_strided_slice %46 {offsets = [1, 0, 0], sizes = [10, 16, 8], strides = [1, 1, 1]} : vector<12x16x8xbf16> to vector<10x16x8xbf16>
    %53 = vector.extract_strided_slice %43 {offsets = [1, 0, 0], sizes = [10, 16, 8], strides = [1, 1, 1]} : vector<12x16x8xbf16> to vector<10x16x8xbf16>
    %54 = vector.extract_strided_slice %48 {offsets = [1, 0, 0], sizes = [10, 16, 8], strides = [1, 1, 1]} : vector<12x16x8xbf16> to vector<10x16x8xbf16>
    %55 = vector.extract_strided_slice %46 {offsets = [2, 0, 0], sizes = [10, 16, 8], strides = [1, 1, 1]} : vector<12x16x8xbf16> to vector<10x16x8xbf16>
    %56 = vector.extract_strided_slice %43 {offsets = [2, 0, 0], sizes = [10, 16, 8], strides = [1, 1, 1]} : vector<12x16x8xbf16> to vector<10x16x8xbf16>
    %57 = vector.extract_strided_slice %48 {offsets = [2, 0, 0], sizes = [10, 16, 8], strides = [1, 1, 1]} : vector<12x16x8xbf16> to vector<10x16x8xbf16>
    %58 = tpu.concatenate %49, %50, %51, %52, %53, %54, %55, %56, %57 in 2 : vector<10x16x8xbf16>, vector<10x16x8xbf16>, vector<10x16x8xbf16>, vector<10x16x8xbf16>, vector<10x16x8xbf16>, vector<10x16x8xbf16>, vector<10x16x8xbf16>, vector<10x16x8xbf16>, vector<10x16x8xbf16> -> vector<10x16x72xbf16>
    %59 = vector.shape_cast %58 : vector<10x16x72xbf16> to vector<160x72xbf16>
    %c0_27 = arith.constant 0 : index
    %c0_28 = arith.constant 0 : index
    %60 = vector.load %arg7[%c0_27, %c0_28] : memref<72x128xbf16, #tpu.memory_space<vmem>>, vector<72x128xbf16>
    %cst_29 = arith.constant dense<0.000000e+00> : vector<160x128xf32>
    %61 = tpu.matmul %59, %60, %cst_29 {dimension_numbers = #tpu.dot_dimension_numbers<[1], [0], [0], [1], [0, 0, 1, 1], [], []>} : vector<160x72xbf16>, vector<72x128xbf16>, vector<160x128xf32> -> vector<160x128xf32>
    %c0_30 = arith.constant 0 : index
    %c0_31 = arith.constant 0 : index
    %62 = vector.load %arg8[%c0_30, %c0_31] : memref<1x128xf32, #tpu.memory_space<vmem>>, vector<1x128xf32>
    %63 = vector.broadcast %62 : vector<1x128xf32> to vector<160x128xf32>
    %64 = arith.mulf %61, %63 : vector<160x128xf32>
    %c0_32 = arith.constant 0 : index
    %c0_33 = arith.constant 0 : index
    %65 = vector.load %arg9[%c0_32, %c0_33] : memref<1x128xf32, #tpu.memory_space<vmem>>, vector<1x128xf32>
    %66 = vector.broadcast %65 : vector<1x128xf32> to vector<160x128xf32>
    %67 = arith.addf %64, %66 : vector<160x128xf32>
    %cst_34 = arith.constant 0.000000e+00 : f32
    %68 = vector.broadcast %cst_34 : f32 to vector<160x128xf32>
    %69 = arith.maximumf %67, %68 : vector<160x128xf32>
    %70 = arith.truncf %69 : vector<160x128xf32> to vector<160x128xbf16>
    %71 = vector.shape_cast %70 : vector<160x128xbf16> to vector<10x16x128xbf16>
    %72 = tpu.iota {dimensions = array<i32: 0>} : vector<10x1x1xi32>
    %c0_i32_35 = arith.constant 0 : i32
    %73 = vector.broadcast %c0_i32_35 : i32 to vector<10x1x1xi32>
    %74 = arith.cmpi ne, %72, %73 : vector<10x1x1xi32>
    %c8_i32_36 = arith.constant 8 : i32
    %75 = arith.muli %arg1, %c8_i32_36 : i32
    %c1_i32_37 = arith.constant 1 : i32
    %76 = arith.subi %75, %c1_i32_37 : i32
    %c0_i32_38 = arith.constant 0 : i32
    %77 = arith.cmpi sge, %76, %c0_i32_38 : i32
    %78 = vector.broadcast %77 : i1 to vector<10x1x1xi1>
    %79 = arith.ori %74, %78 : vector<10x1x1xi1>
    %c9_i32 = arith.constant 9 : i32
    %80 = vector.broadcast %c9_i32 : i32 to vector<10x1x1xi32>
    %81 = arith.cmpi ne, %72, %80 : vector<10x1x1xi32>
    %c1_i32_39 = arith.constant 1 : i32
    %82 = arith.addi %arg1, %c1_i32_39 : i32
    %c8_i32_40 = arith.constant 8 : i32
    %83 = arith.muli %82, %c8_i32_40 : i32
    %c15_i32_41 = arith.constant 15 : i32
    %84 = arith.cmpi sle, %83, %c15_i32_41 : i32
    %85 = vector.broadcast %84 : i1 to vector<10x1x1xi1>
    %86 = arith.ori %81, %85 : vector<10x1x1xi1>
    %87 = arith.andi %79, %86 : vector<10x1x1xi1>
    %88 = arith.extui %87 : vector<10x1x1xi1> to vector<10x1x1xi32>
    %89 = arith.sitofp %88 : vector<10x1x1xi32> to vector<10x1x1xf32>
    %90 = arith.truncf %89 : vector<10x1x1xf32> to vector<10x1x1xbf16>
    %91 = vector.broadcast %90 : vector<10x1x1xbf16> to vector<10x16x128xbf16>
    %92 = arith.mulf %71, %91 : vector<10x16x128xbf16>
    %cst_42 = arith.constant 0.000000e+00 : bf16
    %93 = vector.broadcast %cst_42 : bf16 to vector<10x1x128xbf16>
    %94 = vector.extract_strided_slice %92 {offsets = [0, 0, 0], sizes = [10, 15, 128], strides = [1, 1, 1]} : vector<10x16x128xbf16> to vector<10x15x128xbf16>
    %95 = tpu.concatenate %93, %94 in 1 : vector<10x1x128xbf16>, vector<10x15x128xbf16> -> vector<10x16x128xbf16>
    %96 = vector.extract_strided_slice %92 {offsets = [0, 1, 0], sizes = [10, 15, 128], strides = [1, 1, 1]} : vector<10x16x128xbf16> to vector<10x15x128xbf16>
    %97 = tpu.concatenate %96, %93 in 1 : vector<10x15x128xbf16>, vector<10x1x128xbf16> -> vector<10x16x128xbf16>
    %98 = vector.extract_strided_slice %95 {offsets = [0, 0, 0], sizes = [8, 16, 128], strides = [1, 1, 1]} : vector<10x16x128xbf16> to vector<8x16x128xbf16>
    %99 = vector.extract_strided_slice %92 {offsets = [0, 0, 0], sizes = [8, 16, 128], strides = [1, 1, 1]} : vector<10x16x128xbf16> to vector<8x16x128xbf16>
    %100 = vector.extract_strided_slice %97 {offsets = [0, 0, 0], sizes = [8, 16, 128], strides = [1, 1, 1]} : vector<10x16x128xbf16> to vector<8x16x128xbf16>
    %101 = vector.extract_strided_slice %95 {offsets = [1, 0, 0], sizes = [8, 16, 128], strides = [1, 1, 1]} : vector<10x16x128xbf16> to vector<8x16x128xbf16>
    %102 = vector.extract_strided_slice %92 {offsets = [1, 0, 0], sizes = [8, 16, 128], strides = [1, 1, 1]} : vector<10x16x128xbf16> to vector<8x16x128xbf16>
    %103 = vector.extract_strided_slice %97 {offsets = [1, 0, 0], sizes = [8, 16, 128], strides = [1, 1, 1]} : vector<10x16x128xbf16> to vector<8x16x128xbf16>
    %104 = vector.extract_strided_slice %95 {offsets = [2, 0, 0], sizes = [8, 16, 128], strides = [1, 1, 1]} : vector<10x16x128xbf16> to vector<8x16x128xbf16>
    %105 = vector.extract_strided_slice %92 {offsets = [2, 0, 0], sizes = [8, 16, 128], strides = [1, 1, 1]} : vector<10x16x128xbf16> to vector<8x16x128xbf16>
    %106 = vector.extract_strided_slice %97 {offsets = [2, 0, 0], sizes = [8, 16, 128], strides = [1, 1, 1]} : vector<10x16x128xbf16> to vector<8x16x128xbf16>
    %107 = tpu.concatenate %98, %99, %100, %101, %102, %103, %104, %105, %106 in 2 : vector<8x16x128xbf16>, vector<8x16x128xbf16>, vector<8x16x128xbf16>, vector<8x16x128xbf16>, vector<8x16x128xbf16>, vector<8x16x128xbf16>, vector<8x16x128xbf16>, vector<8x16x128xbf16>, vector<8x16x128xbf16> -> vector<8x16x1152xbf16>
    %108 = vector.shape_cast %107 : vector<8x16x1152xbf16> to vector<128x1152xbf16>
    %c0_43 = arith.constant 0 : index
    %c0_44 = arith.constant 0 : index
    %109 = vector.load %arg10[%c0_43, %c0_44] : memref<1152x128xbf16, #tpu.memory_space<vmem>>, vector<1152x128xbf16>
    %cst_45 = arith.constant dense<0.000000e+00> : vector<128x128xf32>
    %110 = tpu.matmul %108, %109, %cst_45 {dimension_numbers = #tpu.dot_dimension_numbers<[1], [0], [0], [1], [0, 0, 1, 1], [], []>} : vector<128x1152xbf16>, vector<1152x128xbf16>, vector<128x128xf32> -> vector<128x128xf32>
    %c0_46 = arith.constant 0 : index
    %c0_47 = arith.constant 0 : index
    %111 = vector.load %arg11[%c0_46, %c0_47] : memref<1x128xf32, #tpu.memory_space<vmem>>, vector<1x128xf32>
    %112 = vector.broadcast %111 : vector<1x128xf32> to vector<128x128xf32>
    %113 = arith.mulf %110, %112 : vector<128x128xf32>
    %c0_48 = arith.constant 0 : index
    %c0_49 = arith.constant 0 : index
    %114 = vector.load %arg12[%c0_48, %c0_49] : memref<1x128xf32, #tpu.memory_space<vmem>>, vector<1x128xf32>
    %115 = vector.broadcast %114 : vector<1x128xf32> to vector<128x128xf32>
    %116 = arith.addf %113, %115 : vector<128x128xf32>
    %cst_50 = arith.constant 0.000000e+00 : f32
    %117 = vector.broadcast %cst_50 : f32 to vector<128x128xf32>
    %118 = arith.maximumf %116, %117 : vector<128x128xf32>
    %119 = arith.truncf %118 : vector<128x128xf32> to vector<128x128xbf16>
    %c0_51 = arith.constant 0 : index
    %c0_52 = arith.constant 0 : index
    %c0_53 = arith.constant 0 : index
    %c0_54 = arith.constant 0 : index
    %120 = vector.load %arg13[%c0_51, %c0_52, %c0_53, %c0_54] : memref<1x1x128x128xbf16, #tpu.memory_space<vmem>>, vector<1x1x128x128xbf16>
    %121 = vector.shape_cast %120 : vector<1x1x128x128xbf16> to vector<128x128xbf16>
    %122 = vector.shape_cast %119 : vector<128x128xbf16> to vector<1x1x128x128xbf16>
    tpu.vector_store %arg13[%c0_51, %c0_52, %c0_53, %c0_54], %122 {strides = array<i32>} : memref<1x1x128x128xbf16, #tpu.memory_space<vmem>>, vector<1x1x128x128xbf16>,
    return
  }
  func.func @transform_0(%arg0: i32, %arg1: i32) -> (i32, i32, i32, i32) {
    %c0_i32 = arith.constant 0 : i32
    %c0_i32_0 = arith.constant 0 : i32
    %c0_i32_1 = arith.constant 0 : i32
    return %arg0, %arg1, %c0_i32, %c0_i32_0 : i32, i32, i32, i32
  }
  func.func @transform_1(%arg0: i32, %arg1: i32) -> (i32, i32, i32, i32) {
    %c8_i32 = arith.constant 8 : i32
    %0 = arith.muli %arg1, %c8_i32 : i32
    %c-2_i32 = arith.constant -2 : i32
    %1 = arith.addi %0, %c-2_i32 : i32
    %c0_i32 = arith.constant 0 : i32
    %c15_i32 = arith.constant 15 : i32
    %2 = arith.maxsi %c0_i32, %1 : i32
    %3 = arith.minsi %c15_i32, %2 : i32
    %c0_i32_0 = arith.constant 0 : i32
    %c0_i32_1 = arith.constant 0 : i32
    %c0_i32_2 = arith.constant 0 : i32
    return %arg0, %3, %c0_i32_0, %c0_i32_1 : i32, i32, i32, i32
  }
  func.func @transform_2(%arg0: i32, %arg1: i32) -> (i32, i32, i32, i32) {
    %c8_i32 = arith.constant 8 : i32
    %0 = arith.muli %arg1, %c8_i32 : i32
    %c-1_i32 = arith.constant -1 : i32
    %1 = arith.addi %0, %c-1_i32 : i32
    %c0_i32 = arith.constant 0 : i32
    %c15_i32 = arith.constant 15 : i32
    %2 = arith.maxsi %c0_i32, %1 : i32
    %3 = arith.minsi %c15_i32, %2 : i32
    %c0_i32_0 = arith.constant 0 : i32
    %c0_i32_1 = arith.constant 0 : i32
    %c0_i32_2 = arith.constant 0 : i32
    return %arg0, %3, %c0_i32_0, %c0_i32_1 : i32, i32, i32, i32
  }
  func.func @transform_3(%arg0: i32, %arg1: i32) -> (i32, i32, i32, i32) {
    %c8_i32 = arith.constant 8 : i32
    %0 = arith.muli %arg1, %c8_i32 : i32
    %c8_i32_0 = arith.constant 8 : i32
    %1 = arith.addi %0, %c8_i32_0 : i32
    %c0_i32 = arith.constant 0 : i32
    %c15_i32 = arith.constant 15 : i32
    %2 = arith.maxsi %c0_i32, %1 : i32
    %3 = arith.minsi %c15_i32, %2 : i32
    %c0_i32_1 = arith.constant 0 : i32
    %c0_i32_2 = arith.constant 0 : i32
    %c0_i32_3 = arith.constant 0 : i32
    return %arg0, %3, %c0_i32_1, %c0_i32_2 : i32, i32, i32, i32
  }
  func.func @transform_4(%arg0: i32, %arg1: i32) -> (i32, i32, i32, i32) {
    %c8_i32 = arith.constant 8 : i32
    %0 = arith.muli %arg1, %c8_i32 : i32
    %c9_i32 = arith.constant 9 : i32
    %1 = arith.addi %0, %c9_i32 : i32
    %c0_i32 = arith.constant 0 : i32
    %c15_i32 = arith.constant 15 : i32
    %2 = arith.maxsi %c0_i32, %1 : i32
    %3 = arith.minsi %c15_i32, %2 : i32
    %c0_i32_0 = arith.constant 0 : i32
    %c0_i32_1 = arith.constant 0 : i32
    %c0_i32_2 = arith.constant 0 : i32
    return %arg0, %3, %c0_i32_0, %c0_i32_1 : i32, i32, i32, i32
  }
  func.func @transform_5(%arg0: i32, %arg1: i32) -> (i32, i32) {
    %c0_i32 = arith.constant 0 : i32
    %c0_i32_0 = arith.constant 0 : i32
    %c0_i32_1 = arith.constant 0 : i32
    return %c0_i32, %c0_i32_0 : i32, i32
  }
  func.func @transform_6(%arg0: i32, %arg1: i32) -> (i32, i32) {
    %c0_i32 = arith.constant 0 : i32
    %c0_i32_0 = arith.constant 0 : i32
    %c0_i32_1 = arith.constant 0 : i32
    return %c0_i32, %c0_i32_0 : i32, i32
  }
  func.func @transform_7(%arg0: i32, %arg1: i32) -> (i32, i32) {
    %c0_i32 = arith.constant 0 : i32
    %c0_i32_0 = arith.constant 0 : i32
    %c0_i32_1 = arith.constant 0 : i32
    return %c0_i32, %c0_i32_0 : i32, i32
  }
  func.func @transform_8(%arg0: i32, %arg1: i32) -> (i32, i32) {
    %c0_i32 = arith.constant 0 : i32
    %c0_i32_0 = arith.constant 0 : i32
    %c0_i32_1 = arith.constant 0 : i32
    return %c0_i32, %c0_i32_0 : i32, i32
  }
  func.func @transform_9(%arg0: i32, %arg1: i32) -> (i32, i32) {
    %c0_i32 = arith.constant 0 : i32
    %c0_i32_0 = arith.constant 0 : i32
    %c0_i32_1 = arith.constant 0 : i32
    return %c0_i32, %c0_i32_0 : i32, i32
  }
  func.func @transform_10(%arg0: i32, %arg1: i32) -> (i32, i32) {
    %c0_i32 = arith.constant 0 : i32
    %c0_i32_0 = arith.constant 0 : i32
    %c0_i32_1 = arith.constant 0 : i32
    return %c0_i32, %c0_i32_0 : i32, i32
  }
  func.func @transform_11(%arg0: i32, %arg1: i32) -> (i32, i32, i32, i32) {
    %c0_i32 = arith.constant 0 : i32
    %c0_i32_0 = arith.constant 0 : i32
    %c0_i32_1 = arith.constant 0 : i32
    return %arg0, %arg1, %c0_i32, %c0_i32_0 : i32, i32, i32, i32
  }
}

</mosaic_0001>

<llo_original>
// kernel: double_conv_forward.1
$region0: #{double_conv_forward.1}
  #allocation0 [shape = 'u32[]', space=smem, size = 0x4, offset = 0x4, fixed_abs, tag = 'smem constant byte address 0x4 - core index']
  #allocation1 [shape = 'u32[72,128]{1,0:T(1,128)}', space=vmem, size = 0x9000, scoped, tag = 'internal scratch']
  %s0 = inlined_call_operand.vmem [shape: bf16[2,16,16,8], index: 0, kind: input, shape index: {}, may-alias: {0,1,2,3,4}]
  %s1 = inlined_call_operand.vmem [shape: bf16[2,16,16,8], index: 1, kind: input, shape index: {}, may-alias: {0,1,2,3,4}]
  %s2 = inlined_call_operand.vmem [shape: bf16[2,16,16,8], index: 2, kind: input, shape index: {}, may-alias: {0,1,2,3,4}]
  %s3 = inlined_call_operand.vmem [shape: bf16[2,16,16,8], index: 3, kind: input, shape index: {}, may-alias: {0,1,2,3,4}]
  %s4 = inlined_call_operand.vmem [shape: bf16[2,16,16,8], index: 4, kind: input, shape index: {}, may-alias: {0,1,2,3,4}]
  %s5 = inlined_call_operand.vmem [shape: bf16[72,128], index: 5, kind: input, shape index: {}]
  %s6 = inlined_call_operand.vmem [shape: f32[1,128], index: 6, kind: input, shape index: {}]
  %s7 = inlined_call_operand.vmem [shape: f32[1,128], index: 7, kind: input, shape index: {}]
  %s8 = inlined_call_operand.vmem [shape: bf16[1152,128], index: 8, kind: input, shape index: {}]
  %s9 = inlined_call_operand.vmem [shape: f32[1,128], index: 9, kind: input, shape index: {}]
  %s10 = inlined_call_operand.vmem [shape: f32[1,128], index: 10, kind: input, shape index: {}]
  %s11 = inlined_call_operand.vmem [shape: bf16[2,2,128,128], index: 11, kind: output, shape index: {}]
  %s12 = sld [smem:[#allocation0]]
  $region77: #{double_conv_forward.1} parent=0
    _
  %s14 = ssub.s32 1, %s12
  %s15 = scalar_select 0, %s14, %s12
  loop: start=0, step=1, limit=6
  $region2: #{double_conv_forward.1} parent=0 // loop_pre_header
    _
  $region3: #{double_conv_forward.1} parent=0 // loop_header
    %s17 = sphi 0, %s21
    %p18 = scmp.ge.s32.totalorder %s17, 6
    %s24 = sphi 0, %s36
    %s25 = sphi 0, %s32
    %s26 = sphi 0, %s24
    %s27 = sphi 0, %s25
    %s28 = sphi 0, %s26
    %s29 = sphi 0, %s27
    %s41 = sphi 0, %s43
    %s44 = sphi 0, %s41
    %s45 = sphi 0, %s44
    %s61 = sphi 0, %s45
    %s81 = sphi 0, %s83
    %s84 = sphi 0, %s81
    %s85 = sphi 0, %s84
    %s101 = sphi 0, %s85
    %s121 = sphi 0, %s123
    %s124 = sphi 0, %s121
    %s125 = sphi 0, %s124
    %s141 = sphi 0, %s125
    %s161 = sphi 0, %s163
    %s164 = sphi 0, %s161
    %s165 = sphi 0, %s164
    %s181 = sphi 0, %s165
    %s201 = sphi 0, %s203
    %s204 = sphi 0, %s201
    %s205 = sphi 0, %s204
    %s221 = sphi 0, %s205
    %s225 = sphi 0, %s225
    %s227 = sphi 0, %s225
    %s228 = sphi 0, %s227
    %s242 = sphi 0, %s228
    %s246 = sphi 0, %s246
    %s248 = sphi 0, %s246
    %s249 = sphi 0, %s248
    %s263 = sphi 0, %s249
    %s267 = sphi 0, %s267
    %s269 = sphi 0, %s267
    %s270 = sphi 0, %s269
    %s284 = sphi 0, %s270
    %s288 = sphi 0, %s288
    %s290 = sphi 0, %s288
    %s291 = sphi 0, %s290
    %s305 = sphi 0, %s291
    %s309 = sphi 0, %s309
    %s311 = sphi 0, %s309
    %s312 = sphi 0, %s311
    %s326 = sphi 0, %s312
    %s330 = sphi 0, %s330
    %s332 = sphi 0, %s330
    %s333 = sphi 0, %s332
    %s347 = sphi 0, %s333
    %s355 = sphi 0, %s357
    %s358 = sphi 0, %s355
    %s359 = sphi 0, %s358
    %s375 = sphi 0, %s359
  $region4: #{double_conv_forward.1} parent=0 // loop_header_branch
    %20 = sbr.rel (%p18) target = $region8
  $region5: #{double_conv_forward.1} parent=0 // loop_body
    %s22 = ssub.s32 %s17, 1
    %s23 = ssub.s32 %s17, 2
    %s30 = sadd.s32 1, %s25
    %p31 = scmp.ge.s32.totalorder %s30, 2
    %s32 = scalar_select %p31, 0, %s30
    %s33 = sadd.s32 1, %s24
    %s34 = scalar_select %p31, %s33, %s24
    %p35 = scmp.ge.s32.totalorder %s34, 2
    %s36 = scalar_select %p35, 0, %s34
    %s37 = ssub.s32 %s24, %s36
    %s38 = ssub.s32 %s25, %s32
    %s39 = sor.u32 %s37, %s38
    %p40 = scmp.eq.s32.totalorder %s39, 0
    %s42 = sadd.s32 %s41, 1
    %s43 = scalar_select %p40, %s41, %s42
    %p46 = pneg %p40
    %p47 = scmp.eq.s32.totalorder %s17, 3
    %p48 = por %p46, %p47
    %p49 = scmp.ne.s32.totalorder %s41, %s44
    %p50 = scmp.eq.s32.totalorder %s17, 0
    %p51 = por %p49, %p50
    %p52 = scmp.ne.s32.totalorder %s41, %s44
    %p53 = scmp.eq.s32.totalorder %s22, 3
    %p54 = por %p52, %p53
    %p55 = scmp.ne.s32.totalorder %s44, %s45
    %p56 = scmp.eq.s32.totalorder %s22, 0
    %p57 = por %p55, %p56
    %p58 = scmp.ne.s32.totalorder %s44, %s45
    %p59 = scmp.eq.s32.totalorder %s23, 3
    %p60 = por %p58, %p59
    %p62 = scmp.ne.s32.totalorder %s45, %s61
    %p63 = scmp.eq.s32.totalorder %s23, 0
    %p64 = por %p62, %p63
    %s65 = smul.u32 %s25, 8
    %s66 = sadd.s32 %s65, 4294967294
    %p67 = scmp.gt.s32.totalorder %s66, 0
    %s68 = scalar_select %p67, %s66, 0
    %p69 = scmp.lt.s32.totalorder %s68, 15
    %s70 = scalar_select %p69, %s68, 15
    %s71 = smul.u32 %s32, 8
    %s72 = sadd.s32 %s71, 4294967294
    %p73 = scmp.gt.s32.totalorder %s72, 0
    %s74 = scalar_select %p73, %s72, 0
    %p75 = scmp.lt.s32.totalorder %s74, 15
    %s76 = scalar_select %p75, %s74, 15
    %s77 = ssub.s32 %s24, %s36
    %s78 = ssub.s32 %s70, %s76
    %s79 = sor.u32 %s77, %s78
    %p80 = scmp.eq.s32.totalorder %s79, 0
    %s82 = sadd.s32 %s81, 1
    %s83 = scalar_select %p80, %s81, %s82
    %p86 = pneg %p80
    %p87 = scmp.eq.s32.totalorder %s17, 3
    %p88 = por %p86, %p87
    %p89 = scmp.ne.s32.totalorder %s81, %s84
    %p90 = scmp.eq.s32.totalorder %s17, 0
    %p91 = por %p89, %p90
    %p92 = scmp.ne.s32.totalorder %s81, %s84
    %p93 = scmp.eq.s32.totalorder %s22, 3
    %p94 = por %p92, %p93
    %p95 = scmp.ne.s32.totalorder %s84, %s85
    %p96 = scmp.eq.s32.totalorder %s22, 0
    %p97 = por %p95, %p96
    %p98 = scmp.ne.s32.totalorder %s84, %s85
    %p99 = scmp.eq.s32.totalorder %s23, 3
    %p100 = por %p98, %p99
    %p102 = scmp.ne.s32.totalorder %s85, %s101
    %p103 = scmp.eq.s32.totalorder %s23, 0
    %p104 = por %p102, %p103
    %s105 = smul.u32 %s25, 8
    %s106 = sadd.s32 %s105, 4294967295
    %p107 = scmp.gt.s32.totalorder %s106, 0
    %s108 = scalar_select %p107, %s106, 0
    %p109 = scmp.lt.s32.totalorder %s108, 15
    %s110 = scalar_select %p109, %s108, 15
    %s111 = smul.u32 %s32, 8
    %s112 = sadd.s32 %s111, 4294967295
    %p113 = scmp.gt.s32.totalorder %s112, 0
    %s114 = scalar_select %p113, %s112, 0
    %p115 = scmp.lt.s32.totalorder %s114, 15
    %s116 = scalar_select %p115, %s114, 15
    %s117 = ssub.s32 %s24, %s36
    %s118 = ssub.s32 %s110, %s116
    %s119 = sor.u32 %s117, %s118
    %p120 = scmp.eq.s32.totalorder %s119, 0
    %s122 = sadd.s32 %s121, 1
    %s123 = scalar_select %p120, %s121, %s122
    %p126 = pneg %p120
    %p127 = scmp.eq.s32.totalorder %s17, 3
    %p128 = por %p126, %p127
    %p129 = scmp.ne.s32.totalorder %s121, %s124
    %p130 = scmp.eq.s32.totalorder %s17, 0
    %p131 = por %p129, %p130
    %p132 = scmp.ne.s32.totalorder %s121, %s124
    %p133 = scmp.eq.s32.totalorder %s22, 3
    %p134 = por %p132, %p133
    %p135 = scmp.ne.s32.totalorder %s124, %s125
    %p136 = scmp.eq.s32.totalorder %s22, 0
    %p137 = por %p135, %p136
    %p138 = scmp.ne.s32.totalorder %s124, %s125
    %p139 = scmp.eq.s32.totalorder %s23, 3
    %p140 = por %p138, %p139
    %p142 = scmp.ne.s32.totalorder %s125, %s141
    %p143 = scmp.eq.s32.totalorder %s23, 0
    %p144 = por %p142, %p143
    %s145 = smul.u32 %s25, 8
    %s146 = sadd.s32 %s145, 8
    %p147 = scmp.gt.s32.totalorder %s146, 0
    %s148 = scalar_select %p147, %s146, 0
    %p149 = scmp.lt.s32.totalorder %s148, 15
    %s150 = scalar_select %p149, %s148, 15
    %s151 = smul.u32 %s32, 8
    %s152 = sadd.s32 %s151, 8
    %p153 = scmp.gt.s32.totalorder %s152, 0
    %s154 = scalar_select %p153, %s152, 0
    %p155 = scmp.lt.s32.totalorder %s154, 15
    %s156 = scalar_select %p155, %s154, 15
    %s157 = ssub.s32 %s24, %s36
    %s158 = ssub.s32 %s150, %s156
    %s159 = sor.u32 %s157, %s158
    %p160 = scmp.eq.s32.totalorder %s159, 0
    %s162 = sadd.s32 %s161, 1
    %s163 = scalar_select %p160, %s161, %s162
    %p166 = pneg %p160
    %p167 = scmp.eq.s32.totalorder %s17, 3
    %p168 = por %p166, %p167
    %p169 = scmp.ne.s32.totalorder %s161, %s164
    %p170 = scmp.eq.s32.totalorder %s17, 0
    %p171 = por %p169, %p170
    %p172 = scmp.ne.s32.totalorder %s161, %s164
    %p173 = scmp.eq.s32.totalorder %s22, 3
    %p174 = por %p172, %p173
    %p175 = scmp.ne.s32.totalorder %s164, %s165
    %p176 = scmp.eq.s32.totalorder %s22, 0
    %p177 = por %p175, %p176
    %p178 = scmp.ne.s32.totalorder %s164, %s165
    %p179 = scmp.eq.s32.totalorder %s23, 3
    %p180 = por %p178, %p179
    %p182 = scmp.ne.s32.totalorder %s165, %s181
    %p183 = scmp.eq.s32.totalorder %s23, 0
    %p184 = por %p182, %p183
    %s185 = smul.u32 %s25, 8
    %s186 = sadd.s32 %s185, 9
    %p187 = scmp.gt.s32.totalorder %s186, 0
    %s188 = scalar_select %p187, %s186, 0
    %p189 = scmp.lt.s32.totalorder %s188, 15
    %s190 = scalar_select %p189, %s188, 15
    %s191 = smul.u32 %s32, 8
    %s192 = sadd.s32 %s191, 9
    %p193 = scmp.gt.s32.totalorder %s192, 0
    %s194 = scalar_select %p193, %s192, 0
    %p195 = scmp.lt.s32.totalorder %s194, 15
    %s196 = scalar_select %p195, %s194, 15
    %s197 = ssub.s32 %s24, %s36
    %s198 = ssub.s32 %s190, %s196
    %s199 = sor.u32 %s197, %s198
    %p200 = scmp.eq.s32.totalorder %s199, 0
    %s202 = sadd.s32 %s201, 1
    %s203 = scalar_select %p200, %s201, %s202
    %p206 = pneg %p200
    %p207 = scmp.eq.s32.totalorder %s17, 3
    %p208 = por %p206, %p207
    %p209 = scmp.ne.s32.totalorder %s201, %s204
    %p210 = scmp.eq.s32.totalorder %s17, 0
    %p211 = por %p209, %p210
    %p212 = scmp.ne.s32.totalorder %s201, %s204
    %p213 = scmp.eq.s32.totalorder %s22, 3
    %p214 = por %p212, %p213
    %p215 = scmp.ne.s32.totalorder %s204, %s205
    %p216 = scmp.eq.s32.totalorder %s22, 0
    %p217 = por %p215, %p216
    %p218 = scmp.ne.s32.totalorder %s204, %s205
    %p219 = scmp.eq.s32.totalorder %s23, 3
    %p220 = por %p218, %p219
    %p222 = scmp.ne.s32.totalorder %s205, %s221
    %p223 = scmp.eq.s32.totalorder %s23, 0
    %p224 = por %p222, %p223
    %s226 = sadd.s32 %s225, 1
    %p229 = scmp.eq.s32.totalorder %s17, 3
    %p230 = scmp.ne.s32.totalorder %s225, %s227
    %p231 = scmp.eq.s32.totalorder %s17, 0
    %p232 = por %p230, %p231
    %p233 = scmp.ne.s32.totalorder %s225, %s227
    %p234 = scmp.eq.s32.totalorder %s22, 3
    %p235 = por %p233, %p234
    %p236 = scmp.ne.s32.totalorder %s227, %s228
    %p237 = scmp.eq.s32.totalorder %s22, 0
    %p238 = por %p236, %p237
    %p239 = scmp.ne.s32.totalorder %s227, %s228
    %p240 = scmp.eq.s32.totalorder %s23, 3
    %p241 = por %p239, %p240
    %p243 = scmp.ne.s32.totalorder %s228, %s242
    %p244 = scmp.eq.s32.totalorder %s23, 0
    %p245 = por %p243, %p244
    %s247 = sadd.s32 %s246, 1
    %p250 = scmp.eq.s32.totalorder %s17, 3
    %p251 = scmp.ne.s32.totalorder %s246, %s248
    %p252 = scmp.eq.s32.totalorder %s17, 0
    %p253 = por %p251, %p252
    %p254 = scmp.ne.s32.totalorder %s246, %s248
    %p255 = scmp.eq.s32.totalorder %s22, 3
    %p256 = por %p254, %p255
    %p257 = scmp.ne.s32.totalorder %s248, %s249
    %p258 = scmp.eq.s32.totalorder %s22, 0
    %p259 = por %p257, %p258
    %p260 = scmp.ne.s32.totalorder %s248, %s249
    %p261 = scmp.eq.s32.totalorder %s23, 3
    %p262 = por %p260, %p261
    %p264 = scmp.ne.s32.totalorder %s249, %s263
    %p265 = scmp.eq.s32.totalorder %s23, 0
    %p266 = por %p264, %p265
    %s268 = sadd.s32 %s267, 1
    %p271 = scmp.eq.s32.totalorder %s17, 3
    %p272 = scmp.ne.s32.totalorder %s267, %s269
    %p273 = scmp.eq.s32.totalorder %s17, 0
    %p274 = por %p272, %p273
    %p275 = scmp.ne.s32.totalorder %s267, %s269
    %p276 = scmp.eq.s32.totalorder %s22, 3
    %p277 = por %p275, %p276
    %p278 = scmp.ne.s32.totalorder %s269, %s270
    %p279 = scmp.eq.s32.totalorder %s22, 0
    %p280 = por %p278, %p279
    %p281 = scmp.ne.s32.totalorder %s269, %s270
    %p282 = scmp.eq.s32.totalorder %s23, 3
    %p283 = por %p281, %p282
    %p285 = scmp.ne.s32.totalorder %s270, %s284
    %p286 = scmp.eq.s32.totalorder %s23, 0
    %p287 = por %p285, %p286
    %s289 = sadd.s32 %s288, 1
    %p292 = scmp.eq.s32.totalorder %s17, 3
    %p293 = scmp.ne.s32.totalorder %s288, %s290
    %p294 = scmp.eq.s32.totalorder %s17, 0
    %p295 = por %p293, %p294
    %p296 = scmp.ne.s32.totalorder %s288, %s290
    %p297 = scmp.eq.s32.totalorder %s22, 3
    %p298 = por %p296, %p297
    %p299 = scmp.ne.s32.totalorder %s290, %s291
    %p300 = scmp.eq.s32.totalorder %s22, 0
    %p301 = por %p299, %p300
    %p302 = scmp.ne.s32.totalorder %s290, %s291
    %p303 = scmp.eq.s32.totalorder %s23, 3
    %p304 = por %p302, %p303
    %p306 = scmp.ne.s32.totalorder %s291, %s305
    %p307 = scmp.eq.s32.totalorder %s23, 0
    %p308 = por %p306, %p307
    %s310 = sadd.s32 %s309, 1
    %p313 = scmp.eq.s32.totalorder %s17, 3
    %p314 = scmp.ne.s32.totalorder %s309, %s311
    %p315 = scmp.eq.s32.totalorder %s17, 0
    %p316 = por %p314, %p315
    %p317 = scmp.ne.s32.totalorder %s309, %s311
    %p318 = scmp.eq.s32.totalorder %s22, 3
    %p319 = por %p317, %p318
    %p320 = scmp.ne.s32.totalorder %s311, %s312
    %p321 = scmp.eq.s32.totalorder %s22, 0
    %p322 = por %p320, %p321
    %p323 = scmp.ne.s32.totalorder %s311, %s312
    %p324 = scmp.eq.s32.totalorder %s23, 3
    %p325 = por %p323, %p324
    %p327 = scmp.ne.s32.totalorder %s312, %s326
    %p328 = scmp.eq.s32.totalorder %s23, 0
    %p329 = por %p327, %p328
    %s331 = sadd.s32 %s330, 1
    %p334 = scmp.eq.s32.totalorder %s17, 3
    %p335 = scmp.ne.s32.totalorder %s330, %s332
    %p336 = scmp.eq.s32.totalorder %s17, 0
    %p337 = por %p335, %p336
    %p338 = scmp.ne.s32.totalorder %s330, %s332
    %p339 = scmp.eq.s32.totalorder %s22, 3
    %p340 = por %p338, %p339
    %p341 = scmp.ne.s32.totalorder %s332, %s333
    %p342 = scmp.eq.s32.totalorder %s22, 0
    %p343 = por %p341, %p342
    %p344 = scmp.ne.s32.totalorder %s332, %s333
    %p345 = scmp.eq.s32.totalorder %s23, 3
    %p346 = por %p344, %p345
    %p348 = scmp.ne.s32.totalorder %s333, %s347
    %p349 = scmp.eq.s32.totalorder %s23, 0
    %p350 = por %p348, %p349
    %s351 = ssub.s32 %s24, %s36
    %s352 = ssub.s32 %s25, %s32
    %s353 = sor.u32 %s351, %s352
    %p354 = scmp.eq.s32.totalorder %s353, 0
    %s356 = sadd.s32 %s355, 1
    %s357 = scalar_select %p354, %s355, %s356
    %p360 = pneg %p354
    %p361 = scmp.eq.s32.totalorder %s17, 3
    %p362 = por %p360, %p361
    %p363 = scmp.ne.s32.totalorder %s355, %s358
    %p364 = scmp.eq.s32.totalorder %s17, 0
    %p365 = por %p363, %p364
    %p366 = scmp.ne.s32.totalorder %s355, %s358
    %p367 = scmp.eq.s32.totalorder %s22, 3
    %p368 = por %p366, %p367
    %p369 = scmp.ne.s32.totalorder %s358, %s359
    %p370 = scmp.eq.s32.totalorder %s22, 0
    %p371 = por %p369, %p370
    %p372 = scmp.ne.s32.totalorder %s358, %s359
    %p373 = scmp.eq.s32.totalorder %s23, 3
    %p374 = por %p372, %p373
    %p376 = scmp.ne.s32.totalorder %s359, %s375
    %p377 = scmp.eq.s32.totalorder %s23, 0
    %p378 = por %p376, %p377
    %p379 = scmp.le.s32.totalorder 1, %s17
    %p380 = scmp.lt.s32.totalorder %s17, 5
    %p381 = pnand %p379, %p380
    %p382 = pneg %p381
    // Predicated region
    $region9: #{double_conv_forward.1} parent=5 // pred_check
      _
    $region10: #{double_conv_forward.1} parent=5 // pred_check_branch
      %384 = sbr.rel (%p381) target = $region12
    $region11: #{double_conv_forward.1} parent=5 // pred_region
      %s385 = ssub.s32 %s17, 1
      // Predicated region
      $region13: #{double_conv_forward.1} parent=11 // pred_check
        %p386 = pneg %p238
      $region14: #{double_conv_forward.1} parent=11 // pred_check_branch
        %388 = sbr.rel (%p386) target = $region16
      $region15: #{double_conv_forward.1} parent=11 // pred_region
        _
      $region16: #{double_conv_forward.1} parent=11 // pred_fallthru
        _
      // Predicated region
      $region17: #{double_conv_forward.1} parent=11 // pred_check
        %p389 = pneg %p259
      $region18: #{double_conv_forward.1} parent=11 // pred_check_branch
        %391 = sbr.rel (%p389) target = $region20
      $region19: #{double_conv_forward.1} parent=11 // pred_region
        _
      $region20: #{double_conv_forward.1} parent=11 // pred_fallthru
        _
      // Predicated region
      $region21: #{double_conv_forward.1} parent=11 // pred_check
        %p392 = pneg %p280
      $region22: #{double_conv_forward.1} parent=11 // pred_check_branch
        %394 = sbr.rel (%p392) target = $region24
      $region23: #{double_conv_forward.1} parent=11 // pred_region
        _
      $region24: #{double_conv_forward.1} parent=11 // pred_fallthru
        _
      // Predicated region
      $region25: #{double_conv_forward.1} parent=11 // pred_check
        %p395 = pneg %p301
      $region26: #{double_conv_forward.1} parent=11 // pred_check_branch
        %397 = sbr.rel (%p395) target = $region28
      $region27: #{double_conv_forward.1} parent=11 // pred_region
        _
      $region28: #{double_conv_forward.1} parent=11 // pred_fallthru
        _
      // Predicated region
      $region29: #{double_conv_forward.1} parent=11 // pred_check
        %p398 = pneg %p322
      $region30: #{double_conv_forward.1} parent=11 // pred_check_branch
        %400 = sbr.rel (%p398) target = $region32
      $region31: #{double_conv_forward.1} parent=11 // pred_region
        _
      $region32: #{double_conv_forward.1} parent=11 // pred_fallthru
        _
      // Predicated region
      $region33: #{double_conv_forward.1} parent=11 // pred_check
        %p401 = pneg %p343
      $region34: #{double_conv_forward.1} parent=11 // pred_check_branch
        %403 = sbr.rel (%p401) target = $region36
      $region35: #{double_conv_forward.1} parent=11 // pred_region
        _
      $region36: #{double_conv_forward.1} parent=11 // pred_fallthru
        _
    $region12: #{double_conv_forward.1} parent=5 // pred_fallthru
      _
    %p404 = scmp.lt.s32.totalorder %s17, 4
    // Predicated region
    $region37: #{double_conv_forward.1} parent=5 // pred_check
      %p405 = pneg %p404
    $region38: #{double_conv_forward.1} parent=5 // pred_check_branch
      %407 = sbr.rel (%p405) target = $region40
    $region39: #{double_conv_forward.1} parent=5 // pred_region
      // Predicated region
      $region41: #{double_conv_forward.1} parent=39 // pred_check
        %p408 = pneg %p51
      $region42: #{double_conv_forward.1} parent=39 // pred_check_branch
        %410 = sbr.rel (%p408) target = $region44
      $region43: #{double_conv_forward.1} parent=39 // pred_region
        %s411 = smul.u32 8, %s25
        %p412 = scmp.lt.s32.totalorder %s24, 1
        %s413 = scalar_select %p412, %s24, 1
        %p414 = scmp.lt.s32.totalorder %s411, 15
        %s415 = scalar_select %p414, %s411, 15
        %s416 = smul.addr %s415, 2
        %s417 = smul.addr %s413, 32
        %s418 = sadd.s32 %s416, %s417
        %s419 = smul.addr %s418, 4
        %s420 = scalar_lea.vmem %s0, %s419
        %s421 = smul.u32 8, %s25
      $region44: #{double_conv_forward.1} parent=39 // pred_fallthru
        _
      // Predicated region
      $region45: #{double_conv_forward.1} parent=39 // pred_check
        %p422 = pneg %p91
      $region46: #{double_conv_forward.1} parent=39 // pred_check_branch
        %424 = sbr.rel (%p422) target = $region48
      $region47: #{double_conv_forward.1} parent=39 // pred_region
        %s425 = smul.u32 %s25, 8
        %s426 = sadd.s32 %s425, 4294967294
        %p427 = scmp.gt.s32.totalorder %s426, 0
        %s428 = scalar_select %p427, %s426, 0
        %p429 = scmp.lt.s32.totalorder %s428, 15
        %s430 = scalar_select %p429, %s428, 15
        %p431 = scmp.lt.s32.totalorder %s24, 1
        %s432 = scalar_select %p431, %s24, 1
        %p433 = scmp.lt.s32.totalorder %s430, 15
        %s434 = scalar_select %p433, %s430, 15
        %s435 = smul.addr %s434, 2
        %s436 = smul.addr %s432, 32
        %s437 = sadd.s32 %s435, %s436
        %s438 = smul.addr %s437, 4
        %s439 = scalar_lea.vmem %s1, %s438
        %s440 = smul.u32 %s25, 8
        %s441 = sadd.s32 %s440, 4294967294
        %p442 = scmp.gt.s32.totalorder %s441, 0
        %s443 = scalar_select %p442, %s441, 0
        %p444 = scmp.lt.s32.totalorder %s443, 15
        %s445 = scalar_select %p444, %s443, 15
      $region48: #{double_conv_forward.1} parent=39 // pred_fallthru
        _
      // Predicated region
      $region49: #{double_conv_forward.1} parent=39 // pred_check
        %p446 = pneg %p131
      $region50: #{double_conv_forward.1} parent=39 // pred_check_branch
        %448 = sbr.rel (%p446) target = $region52
      $region51: #{double_conv_forward.1} parent=39 // pred_region
        %s449 = smul.u32 %s25, 8
        %s450 = sadd.s32 %s449, 4294967295
        %p451 = scmp.gt.s32.totalorder %s450, 0
        %s452 = scalar_select %p451, %s450, 0
        %p453 = scmp.lt.s32.totalorder %s452, 15
        %s454 = scalar_select %p453, %s452, 15
        %p455 = scmp.lt.s32.totalorder %s24, 1
        %s456 = scalar_select %p455, %s24, 1
        %p457 = scmp.lt.s32.totalorder %s454, 15
        %s458 = scalar_select %p457, %s454, 15
        %s459 = smul.addr %s458, 2
        %s460 = smul.addr %s456, 32
        %s461 = sadd.s32 %s459, %s460
        %s462 = smul.addr %s461, 4
        %s463 = scalar_lea.vmem %s2, %s462
        %s464 = smul.u32 %s25, 8
        %s465 = sadd.s32 %s464, 4294967295
        %p466 = scmp.gt.s32.totalorder %s465, 0
        %s467 = scalar_select %p466, %s465, 0
        %p468 = scmp.lt.s32.totalorder %s467, 15
        %s469 = scalar_select %p468, %s467, 15
      $region52: #{double_conv_forward.1} parent=39 // pred_fallthru
        _
      // Predicated region
      $region53: #{double_conv_forward.1} parent=39 // pred_check
        %p470 = pneg %p171
      $region54: #{double_conv_forward.1} parent=39 // pred_check_branch
        %472 = sbr.rel (%p470) target = $region56
      $region55: #{double_conv_forward.1} parent=39 // pred_region
        %s473 = smul.u32 %s25, 8
        %s474 = sadd.s32 %s473, 8
        %p475 = scmp.gt.s32.totalorder %s474, 0
        %s476 = scalar_select %p475, %s474, 0
        %p477 = scmp.lt.s32.totalorder %s476, 15
        %s478 = scalar_select %p477, %s476, 15
        %p479 = scmp.lt.s32.totalorder %s24, 1
        %s480 = scalar_select %p479, %s24, 1
        %p481 = scmp.lt.s32.totalorder %s478, 15
        %s482 = scalar_select %p481, %s478, 15
        %s483 = smul.addr %s482, 2
        %s484 = smul.addr %s480, 32
        %s485 = sadd.s32 %s483, %s484
        %s486 = smul.addr %s485, 4
        %s487 = scalar_lea.vmem %s3, %s486
        %s488 = smul.u32 %s25, 8
        %s489 = sadd.s32 %s488, 8
        %p490 = scmp.gt.s32.totalorder %s489, 0
        %s491 = scalar_select %p490, %s489, 0
        %p492 = scmp.lt.s32.totalorder %s491, 15
        %s493 = scalar_select %p492, %s491, 15
      $region56: #{double_conv_forward.1} parent=39 // pred_fallthru
        _
      // Predicated region
      $region57: #{double_conv_forward.1} parent=39 // pred_check
        %p494 = pneg %p211
      $region58: #{double_conv_forward.1} parent=39 // pred_check_branch
        %496 = sbr.rel (%p494) target = $region60
      $region59: #{double_conv_forward.1} parent=39 // pred_region
        %s497 = smul.u32 %s25, 8
        %s498 = sadd.s32 %s497, 9
        %p499 = scmp.gt.s32.totalorder %s498, 0
        %s500 = scalar_select %p499, %s498, 0
        %p501 = scmp.lt.s32.totalorder %s500, 15
        %s502 = scalar_select %p501, %s500, 15
        %p503 = scmp.lt.s32.totalorder %s24, 1
        %s504 = scalar_select %p503, %s24, 1
        %p505 = scmp.lt.s32.totalorder %s502, 15
        %s506 = scalar_select %p505, %s502, 15
        %s507 = smul.addr %s506, 2
        %s508 = smul.addr %s504, 32
        %s509 = sadd.s32 %s507, %s508
        %s510 = smul.addr %s509, 4
        %s511 = scalar_lea.vmem %s4, %s510
        %s512 = smul.u32 %s25, 8
        %s513 = sadd.s32 %s512, 9
        %p514 = scmp.gt.s32.totalorder %s513, 0
        %s515 = scalar_select %p514, %s513, 0
        %p516 = scmp.lt.s32.totalorder %s515, 15
        %s517 = scalar_select %p516, %s515, 15
      $region60: #{double_conv_forward.1} parent=39 // pred_fallthru
        _
    $region40: #{double_conv_forward.1} parent=5 // pred_fallthru
      _
    %p518 = scmp.le.s32.totalorder 1, %s17
    %p519 = scmp.lt.s32.totalorder %s17, 5
    %p520 = pnand %p518, %p519
    %p521 = pneg %p520
    // Predicated region
    $region61: #{double_conv_forward.1} parent=5 // pred_check
      _
    $region62: #{double_conv_forward.1} parent=5 // pred_check_branch
      %523 = sbr.rel (%p520) target = $region64
    $region63: #{double_conv_forward.1} parent=5 // pred_region
      %s524 = ssub.s32 %s17, 1
      %s525 = smul.u32 8, %s27
      %p526 = scmp.lt.s32.totalorder %s26, 1
      %s527 = scalar_select %p526, %s26, 1
      %p528 = scmp.lt.s32.totalorder %s525, 15
      %s529 = scalar_select %p528, %s525, 15
      %s530 = smul.addr %s529, 2
      %s531 = smul.addr %s527, 32
      %s532 = sadd.s32 %s530, %s531
      %s533 = smul.addr %s532, 4
      %s534 = scalar_lea.vmem %s0, %s533
      %p535 = pneg %p57
      %p536 = pneg %p54
      %s537 = smul.u32 %s27, 8
      %s538 = sadd.s32 %s537, 4294967294
      %p539 = scmp.gt.s32.totalorder %s538, 0
      %s540 = scalar_select %p539, %s538, 0
      %p541 = scmp.lt.s32.totalorder %s540, 15
      %s542 = scalar_select %p541, %s540, 15
      %p543 = scmp.lt.s32.totalorder %s26, 1
      %s544 = scalar_select %p543, %s26, 1
      %p545 = scmp.lt.s32.totalorder %s542, 15
      %s546 = scalar_select %p545, %s542, 15
      %s547 = smul.addr %s546, 2
      %s548 = smul.addr %s544, 32
      %s549 = sadd.s32 %s547, %s548
      %s550 = smul.addr %s549, 4
      %s551 = scalar_lea.vmem %s1, %s550
      %p552 = pneg %p97
      %p553 = pneg %p94
      %s554 = smul.u32 %s27, 8
      %s555 = sadd.s32 %s554, 4294967295
      %p556 = scmp.gt.s32.totalorder %s555, 0
      %s557 = scalar_select %p556, %s555, 0
      %p558 = scmp.lt.s32.totalorder %s557, 15
      %s559 = scalar_select %p558, %s557, 15
      %p560 = scmp.lt.s32.totalorder %s26, 1
      %s561 = scalar_select %p560, %s26, 1
      %p562 = scmp.lt.s32.totalorder %s559, 15
      %s563 = scalar_select %p562, %s559, 15
      %s564 = smul.addr %s563, 2
      %s565 = smul.addr %s561, 32
      %s566 = sadd.s32 %s564, %s565
      %s567 = smul.addr %s566, 4
      %s568 = scalar_lea.vmem %s2, %s567
      %p569 = pneg %p137
      %p570 = pneg %p134
      %s571 = smul.u32 %s27, 8
      %s572 = sadd.s32 %s571, 8
      %p573 = scmp.gt.s32.totalorder %s572, 0
      %s574 = scalar_select %p573, %s572, 0
      %p575 = scmp.lt.s32.totalorder %s574, 15
      %s576 = scalar_select %p575, %s574, 15
      %p577 = scmp.lt.s32.totalorder %s26, 1
      %s578 = scalar_select %p577, %s26, 1
      %p579 = scmp.lt.s32.totalorder %s576, 15
      %s580 = scalar_select %p579, %s576, 15
      %s581 = smul.addr %s580, 2
      %s582 = smul.addr %s578, 32
      %s583 = sadd.s32 %s581, %s582
      %s584 = smul.addr %s583, 4
      %s585 = scalar_lea.vmem %s3, %s584
      %p586 = pneg %p177
      %p587 = pneg %p174
      %s588 = smul.u32 %s27, 8
      %s589 = sadd.s32 %s588, 9
      %p590 = scmp.gt.s32.totalorder %s589, 0
      %s591 = scalar_select %p590, %s589, 0
      %p592 = scmp.lt.s32.totalorder %s591, 15
      %s593 = scalar_select %p592, %s591, 15
      %p594 = scmp.lt.s32.totalorder %s26, 1
      %s595 = scalar_select %p594, %s26, 1
      %p596 = scmp.lt.s32.totalorder %s593, 15
      %s597 = scalar_select %p596, %s593, 15
      %s598 = smul.addr %s597, 2
      %s599 = smul.addr %s595, 32
      %s600 = sadd.s32 %s598, %s599
      %s601 = smul.addr %s600, 4
      %s602 = scalar_lea.vmem %s4, %s601
      %p603 = pneg %p217
      %p604 = pneg %p214
      %p605 = pneg %p238
      %p606 = pneg %p235
      %p607 = pneg %p259
      %p608 = pneg %p256
      %p609 = pneg %p280
      %p610 = pneg %p277
      %p611 = pneg %p301
      %p612 = pneg %p298
      %p613 = pneg %p322
      %p614 = pneg %p319
      %p615 = pneg %p343
      %p616 = pneg %p340
      %p617 = pneg %p371
      %p618 = pneg %p368
      %p619 = scmp.lt.s32.totalorder %s26, 1
      %s620 = scalar_select %p619, %s26, 1
      %p621 = scmp.lt.s32.totalorder %s27, 1
      %s622 = scalar_select %p621, %s27, 1
      %s623 = smul.addr %s622, 16
      %s624 = smul.addr %s620, 32
      %s625 = sadd.s32 %s623, %s624
      %s626 = smul.addr %s625, 4
      %s627 = scalar_lea.vmem %s11, %s626
      %s628 = smul.u32 8, %s27
      %p629 = scmp.lt.s32.totalorder %s26, 1
      %s630 = scalar_select %p629, %s26, 1
      %p631 = scmp.lt.s32.totalorder %s628, 15
      %s632 = scalar_select %p631, %s628, 15
      %s633 = smul.addr %s632, 2
      %s634 = smul.addr %s630, 32
      %s635 = sadd.s32 %s633, %s634
      %s636 = smul.addr %s635, 4
      %s637 = scalar_lea.vmem %s0, %s636
      %s638 = smul.u32 8, %s27
      %s639 = smul.u32 %s27, 8
      %s640 = sadd.s32 %s639, 4294967294
      %p641 = scmp.gt.s32.totalorder %s640, 0
      %s642 = scalar_select %p641, %s640, 0
      %p643 = scmp.lt.s32.totalorder %s642, 15
      %s644 = scalar_select %p643, %s642, 15
      %p645 = scmp.lt.s32.totalorder %s26, 1
      %s646 = scalar_select %p645, %s26, 1
      %p647 = scmp.lt.s32.totalorder %s644, 15
      %s648 = scalar_select %p647, %s644, 15
      %s649 = smul.addr %s648, 2
      %s650 = smul.addr %s646, 32
      %s651 = sadd.s32 %s649, %s650
      %s652 = smul.addr %s651, 4
      %s653 = scalar_lea.vmem %s1, %s652
      %s654 = smul.u32 %s27, 8
      %s655 = sadd.s32 %s654, 4294967294
      %p656 = scmp.gt.s32.totalorder %s655, 0
      %s657 = scalar_select %p656, %s655, 0
      %p658 = scmp.lt.s32.totalorder %s657, 15
      %s659 = scalar_select %p658, %s657, 15
      %s660 = smul.u32 %s27, 8
      %s661 = sadd.s32 %s660, 4294967295
      %p662 = scmp.gt.s32.totalorder %s661, 0
      %s663 = scalar_select %p662, %s661, 0
      %p664 = scmp.lt.s32.totalorder %s663, 15
      %s665 = scalar_select %p664, %s663, 15
      %p666 = scmp.lt.s32.totalorder %s26, 1
      %s667 = scalar_select %p666, %s26, 1
      %p668 = scmp.lt.s32.totalorder %s665, 15
      %s669 = scalar_select %p668, %s665, 15
      %s670 = smul.addr %s669, 2
      %s671 = smul.addr %s667, 32
      %s672 = sadd.s32 %s670, %s671
      %s673 = smul.addr %s672, 4
      %s674 = scalar_lea.vmem %s2, %s673
      %s675 = smul.u32 %s27, 8
      %s676 = sadd.s32 %s675, 4294967295
      %p677 = scmp.gt.s32.totalorder %s676, 0
      %s678 = scalar_select %p677, %s676, 0
      %p679 = scmp.lt.s32.totalorder %s678, 15
      %s680 = scalar_select %p679, %s678, 15
      %s681 = smul.u32 %s27, 8
      %s682 = sadd.s32 %s681, 8
      %p683 = scmp.gt.s32.totalorder %s682, 0
      %s684 = scalar_select %p683, %s682, 0
      %p685 = scmp.lt.s32.totalorder %s684, 15
      %s686 = scalar_select %p685, %s684, 15
      %p687 = scmp.lt.s32.totalorder %s26, 1
      %s688 = scalar_select %p687, %s26, 1
      %p689 = scmp.lt.s32.totalorder %s686, 15
      %s690 = scalar_select %p689, %s686, 15
      %s691 = smul.addr %s690, 2
      %s692 = smul.addr %s688, 32
      %s693 = sadd.s32 %s691, %s692
      %s694 = smul.addr %s693, 4
      %s695 = scalar_lea.vmem %s3, %s694
      %s696 = smul.u32 %s27, 8
      %s697 = sadd.s32 %s696, 8
      %p698 = scmp.gt.s32.totalorder %s697, 0
      %s699 = scalar_select %p698, %s697, 0
      %p700 = scmp.lt.s32.totalorder %s699, 15
      %s701 = scalar_select %p700, %s699, 15
      %s702 = smul.u32 %s27, 8
      %s703 = sadd.s32 %s702, 9
      %p704 = scmp.gt.s32.totalorder %s703, 0
      %s705 = scalar_select %p704, %s703, 0
      %p706 = scmp.lt.s32.totalorder %s705, 15
      %s707 = scalar_select %p706, %s705, 15
      %p708 = scmp.lt.s32.totalorder %s26, 1
      %s709 = scalar_select %p708, %s26, 1
      %p710 = scmp.lt.s32.totalorder %s707, 15
      %s711 = scalar_select %p710, %s707, 15
      %s712 = smul.addr %s711, 2
      %s713 = smul.addr %s709, 32
      %s714 = sadd.s32 %s712, %s713
      %s715 = smul.addr %s714, 4
      %s716 = scalar_lea.vmem %s4, %s715
      %s717 = smul.u32 %s27, 8
      %s718 = sadd.s32 %s717, 9
      %p719 = scmp.gt.s32.totalorder %s718, 0
      %s720 = scalar_select %p719, %s718, 0
      %p721 = scmp.lt.s32.totalorder %s720, 15
      %s722 = scalar_select %p721, %s720, 15
      %p723 = scmp.lt.s32.totalorder %s26, 1
      %s724 = scalar_select %p723, %s26, 1
      %p725 = scmp.lt.s32.totalorder %s27, 1
      %s726 = scalar_select %p725, %s27, 1
      %s727 = smul.addr %s726, 16
      %s728 = smul.addr %s724, 32
      %s729 = sadd.s32 %s727, %s728
      %s730 = smul.addr %s729, 4
      %s731 = scalar_lea.vmem %s11, %s730
      %s733 = smul.u32 %s27, 8
      %s734 = ssub.s32 %s733, 2
      %p735 = scmp.ge.s32.totalorder %s734, 0
      %s736 = scalar_select %p735, 1, 0
      %s737 = scvt.s32.f32 %s736
      %p739 = scmp.ne.f32.partialorder %s737, %s737
      %s740 = sshrl.u32 %s737, 16
      %s741 = sand.u32 %s740, 1
      %s742 = sadd.s32 32767, %s741
      %s743 = sadd.s32 %s737, %s742
      %s744 = sand.u32 %s743, 4294901760
      %s745 = scalar_select %p739, 2143289344, %s744
      %s747 = sshrl.u32 %s745, 16
      %s748 = ssub.s32 %s733, 1
      %p749 = scmp.ge.s32.totalorder %s748, 0
      %s750 = scalar_select %p749, 1, 0
      %s751 = scvt.s32.f32 %s750
      %p753 = scmp.ne.f32.partialorder %s751, %s751
      %s754 = sshrl.u32 %s751, 16
      %s755 = sand.u32 %s754, 1
      %s756 = sadd.s32 32767, %s755
      %s757 = sadd.s32 %s751, %s756
      %s758 = sand.u32 %s757, 4294901760
      %s759 = scalar_select %p753, 2143289344, %s758
      %s761 = sshrl.u32 %s759, 16
      %s762 = sadd.s32 %s27, 1
      %s763 = smul.u32 %s762, 8
      %p764 = scmp.le.s32.totalorder %s763, 15
      %s765 = scalar_select %p764, 1, 0
      %s766 = scvt.s32.f32 %s765
      %p768 = scmp.ne.f32.partialorder %s766, %s766
      %s769 = sshrl.u32 %s766, 16
      %s770 = sand.u32 %s769, 1
      %s771 = sadd.s32 32767, %s770
      %s772 = sadd.s32 %s766, %s771
      %s773 = sand.u32 %s772, 4294901760
      %s774 = scalar_select %p768, 2143289344, %s773
      %s776 = sshrl.u32 %s774, 16
      %s777 = sadd.s32 %s763, 1
      %p778 = scmp.le.s32.totalorder %s777, 15
      %s779 = scalar_select %p778, 1, 0
      %s780 = scvt.s32.f32 %s779
      %p782 = scmp.ne.f32.partialorder %s780, %s780
      %s783 = sshrl.u32 %s780, 16
      %s784 = sand.u32 %s783, 1
      %s785 = sadd.s32 32767, %s784
      %s786 = sadd.s32 %s780, %s785
      %s787 = sand.u32 %s786, 4294901760
      %s788 = scalar_select %p782, 2143289344, %s787
      %s790 = sshrl.u32 %s788, 16
      %v791 = vld [vmem:[%s653] sm:$0xf]
      %v792 = vld [vmem:[%s653 + $0x4] sm:$0xf]
      %s793 = sshll.u32 %s747, 16
      %s794 = sor.u32 %s747, %s793
      %v795 = vstv %s794
      %v797 = vunpack.c.l.bf16 %v791
      %v798 = vunpack.c.l.bf16 %v792
      %v799 = vunpack.c.l.bf16 %v795
      %v800 = vmul.f32 %v797, %v799
      %v801 = vmul.f32 %v798, %v799
      %v802 = vpack.c.bf16 %v800, %v800
      %v803 = vpack.c.bf16 %v801, %v801
      %v804 = vld [vmem:[%s674] sm:$0xf]
      %v805 = vld [vmem:[%s674 + $0x4] sm:$0xf]
      %s806 = sshll.u32 %s761, 16
      %s807 = sor.u32 %s761, %s806
      %v808 = vstv %s807
      %v810 = vunpack.c.l.bf16 %v804
      %v811 = vunpack.c.l.bf16 %v805
      %v812 = vunpack.c.l.bf16 %v808
      %v813 = vmul.f32 %v810, %v812
      %v814 = vmul.f32 %v811, %v812
      %v815 = vpack.c.bf16 %v813, %v813
      %v816 = vpack.c.bf16 %v814, %v814
      %v817 = vld [vmem:[%s637] sm:$0xf]
      %v818 = vld [vmem:[%s637 + $0x4] sm:$0xf]
      %v819 = vld [vmem:[%s637 + $0x8] sm:$0xf]
      %v820 = vld [vmem:[%s637 + $0xc] sm:$0xf]
      %v821 = vld [vmem:[%s637 + $0x10] sm:$0xf]
      %v822 = vld [vmem:[%s637 + $0x14] sm:$0xf]
      %v823 = vld [vmem:[%s637 + $0x18] sm:$0xf]
      %v824 = vld [vmem:[%s637 + $0x1c] sm:$0xf]
      %v825 = vld [vmem:[%s637 + $0x20] sm:$0xf]
      %v826 = vld [vmem:[%s637 + $0x24] sm:$0xf]
      %v827 = vld [vmem:[%s637 + $0x28] sm:$0xf]
      %v828 = vld [vmem:[%s637 + $0x2c] sm:$0xf]
      %v829 = vld [vmem:[%s637 + $0x30] sm:$0xf]
      %v830 = vld [vmem:[%s637 + $0x34] sm:$0xf]
      %v831 = vld [vmem:[%s637 + $0x38] sm:$0xf]
      %v832 = vld [vmem:[%s637 + $0x3c] sm:$0xf]
      %v833 = vld [vmem:[%s695] sm:$0xf]
      %v834 = vld [vmem:[%s695 + $0x4] sm:$0xf]
      %s835 = sshll.u32 %s776, 16
      %s836 = sor.u32 %s776, %s835
      %v837 = vstv %s836
      %v839 = vunpack.c.l.bf16 %v833
      %v840 = vunpack.c.l.bf16 %v834
      %v841 = vunpack.c.l.bf16 %v837
      %v842 = vmul.f32 %v839, %v841
      %v843 = vmul.f32 %v840, %v841
      %v844 = vpack.c.bf16 %v842, %v842
      %v845 = vpack.c.bf16 %v843, %v843
      %v846 = vld [vmem:[%s716] sm:$0xf]
      %v847 = vld [vmem:[%s716 + $0x4] sm:$0xf]
      %s848 = sshll.u32 %s790, 16
      %s849 = sor.u32 %s790, %s848
      %v850 = vstv %s849
      %v852 = vunpack.c.l.bf16 %v846
      %v853 = vunpack.c.l.bf16 %v847
      %v854 = vunpack.c.l.bf16 %v850
      %v855 = vmul.f32 %v852, %v854
      %v856 = vmul.f32 %v853, %v854
      %v857 = vpack.c.bf16 %v855, %v855
      %v858 = vpack.c.bf16 %v856, %v856
      %v883 = vunpack.c.l.b16 %v802
      %v884 = vunpack.c.l.b16 %v803
      %v885 = vunpack.c.l.b16 %v815
      %v886 = vunpack.c.l.b16 %v816
      %v887 = vunpack.c.l.b16 %v817
      %v888 = vunpack.c.l.b16 %v818
      %v889 = vunpack.c.l.b16 %v819
      %v890 = vunpack.c.l.b16 %v820
      %v891 = vunpack.c.l.b16 %v821
      %v892 = vunpack.c.l.b16 %v822
      %v893 = vunpack.c.l.b16 %v823
      %v894 = vunpack.c.l.b16 %v824
      %v895 = vunpack.c.l.b16 %v825
      %v896 = vunpack.c.l.b16 %v826
      %v897 = vunpack.c.l.b16 %v827
      %v898 = vunpack.c.l.b16 %v828
      %v899 = vunpack.c.l.b16 %v829
      %v900 = vunpack.c.l.b16 %v830
      %v901 = vunpack.c.l.b16 %v831
      %v902 = vunpack.c.l.b16 %v832
      %v903 = vunpack.c.l.b16 %v844
      %v904 = vunpack.c.l.b16 %v845
      %v905 = vunpack.c.l.b16 %v857
      %v906 = vunpack.c.l.b16 %v858
      %v907 = vpack.c.b16 %v884, %v883
      %v908 = vpack.c.b16 %v886, %v885
      %v909 = vpack.c.b16 %v888, %v887
      %v910 = vpack.c.b16 %v890, %v889
      %v911 = vpack.c.b16 %v892, %v891
      %v912 = vpack.c.b16 %v894, %v893
      %v913 = vpack.c.b16 %v896, %v895
      %v914 = vpack.c.b16 %v898, %v897
      %v915 = vpack.c.b16 %v900, %v899
      %v916 = vpack.c.b16 %v902, %v901
      %v917 = vpack.c.b16 %v904, %v903
      %v918 = vpack.c.b16 %v906, %v905
      %v920 = vshrl.u32 %v907, 16
      %v922 = vrot.slane %v920, 7
      %v923 = vshll.u32 %v907, 16
      %v925 = vor.u32 %v922, %v923
      %v927 = vshrl.u32 %v908, 16
      %v929 = vrot.slane %v927, 7
      %v930 = vshll.u32 %v908, 16
      %v932 = vor.u32 %v929, %v930
      %v934 = vshrl.u32 %v909, 16
      %v936 = vrot.slane %v934, 7
      %v937 = vshll.u32 %v909, 16
      %v939 = vor.u32 %v936, %v937
      %v941 = vshrl.u32 %v910, 16
      %v943 = vrot.slane %v941, 7
      %v944 = vshll.u32 %v910, 16
      %v946 = vor.u32 %v943, %v944
      %v948 = vshrl.u32 %v911, 16
      %v950 = vrot.slane %v948, 7
      %v951 = vshll.u32 %v911, 16
      %v953 = vor.u32 %v950, %v951
      %v955 = vshrl.u32 %v912, 16
      %v957 = vrot.slane %v955, 7
      %v958 = vshll.u32 %v912, 16
      %v960 = vor.u32 %v957, %v958
      %v962 = vshrl.u32 %v913, 16
      %v964 = vrot.slane %v962, 7
      %v965 = vshll.u32 %v913, 16
      %v967 = vor.u32 %v964, %v965
      %v969 = vshrl.u32 %v914, 16
      %v971 = vrot.slane %v969, 7
      %v972 = vshll.u32 %v914, 16
      %v974 = vor.u32 %v971, %v972
      %v976 = vshrl.u32 %v915, 16
      %v978 = vrot.slane %v976, 7
      %v979 = vshll.u32 %v915, 16
      %v981 = vor.u32 %v978, %v979
      %v983 = vshrl.u32 %v916, 16
      %v985 = vrot.slane %v983, 7
      %v986 = vshll.u32 %v916, 16
      %v988 = vor.u32 %v985, %v986
      %v990 = vshrl.u32 %v917, 16
      %v992 = vrot.slane %v990, 7
      %v993 = vshll.u32 %v917, 16
      %v995 = vor.u32 %v992, %v993
      %v997 = vshrl.u32 %v918, 16
      %v999 = vrot.slane %v997, 7
      %v1000 = vshll.u32 %v918, 16
      %v1002 = vor.u32 %v999, %v1000
      %vm1015 = vcmask 1040384
      %vm1016 = vsmask.f32 256
      %vm1017 = vmand %vm1015, %vm1016
      %v1018 = vsel %vm1017, 0, %v925
      %v1019 = vsel %vm1017, 0, %v932
      %v1020 = vsel %vm1017, 0, %v939
      %v1021 = vsel %vm1017, 0, %v946
      %v1022 = vsel %vm1017, 0, %v953
      %v1023 = vsel %vm1017, 0, %v960
      %v1024 = vsel %vm1017, 0, %v967
      %v1025 = vsel %vm1017, 0, %v974
      %v1026 = vsel %vm1017, 0, %v981
      %v1027 = vsel %vm1017, 0, %v988
      %v1028 = vsel %vm1017, 0, %v995
      %v1029 = vsel %vm1017, 0, %v1002
      %v1030 = vrot.slane %v923, 1
      %v1031 = vor.u32 %v920, %v1030
      %v1032 = vrot.slane %v930, 1
      %v1033 = vor.u32 %v927, %v1032
      %v1034 = vrot.slane %v937, 1
      %v1035 = vor.u32 %v934, %v1034
      %v1036 = vrot.slane %v944, 1
      %v1037 = vor.u32 %v941, %v1036
      %v1038 = vrot.slane %v951, 1
      %v1039 = vor.u32 %v948, %v1038
      %v1040 = vrot.slane %v958, 1
      %v1041 = vor.u32 %v955, %v1040
      %v1042 = vrot.slane %v965, 1
      %v1043 = vor.u32 %v962, %v1042
      %v1044 = vrot.slane %v972, 1
      %v1045 = vor.u32 %v969, %v1044
      %v1046 = vrot.slane %v979, 1
      %v1047 = vor.u32 %v976, %v1046
      %v1048 = vrot.slane %v986, 1
      %v1049 = vor.u32 %v983, %v1048
      %v1050 = vrot.slane %v993, 1
      %v1051 = vor.u32 %v990, %v1050
      %v1052 = vrot.slane %v1000, 1
      %v1053 = vor.u32 %v997, %v1052
      %vm1066 = vcmask 1047552
      %vm1067 = vsmask.f32 7424
      %vm1068 = vmand %vm1066, %vm1067
      %v1069 = vsel %vm1068, %v1031, 0
      %v1070 = vsel %vm1068, %v1033, 0
      %v1071 = vsel %vm1068, %v1035, 0
      %v1072 = vsel %vm1068, %v1037, 0
      %v1073 = vsel %vm1068, %v1039, 0
      %v1074 = vsel %vm1068, %v1041, 0
      %v1075 = vsel %vm1068, %v1043, 0
      %v1076 = vsel %vm1068, %v1045, 0
      %v1077 = vsel %vm1068, %v1047, 0
      %v1078 = vsel %vm1068, %v1049, 0
      %v1079 = vsel %vm1068, %v1051, 0
      %v1080 = vsel %vm1068, %v1053, 0
      %1081 = vrot.lane.b32.xlu0 %v907, 8
      %v1082 = vpop.permute.xlu0 %1081
      %1083 = vrot.lane.b32.xlu0 %v908, 8
      %v1084 = vpop.permute.xlu0 %1083
      %1085 = vrot.lane.b32.xlu0 %v909, 8
      %v1086 = vpop.permute.xlu0 %1085
      %1087 = vrot.lane.b32.xlu0 %v910, 8
      %v1088 = vpop.permute.xlu0 %1087
      %1089 = vrot.lane.b32.xlu0 %v911, 8
      %v1090 = vpop.permute.xlu0 %1089
      %1091 = vrot.lane.b32.xlu0 %v912, 8
      %v1092 = vpop.permute.xlu0 %1091
      %1093 = vrot.lane.b32.xlu0 %v913, 8
      %v1094 = vpop.permute.xlu0 %1093
      %1095 = vrot.lane.b32.xlu0 %v914, 8
      %v1096 = vpop.permute.xlu0 %1095
      %1097 = vrot.lane.b32.xlu0 %v915, 8
      %v1098 = vpop.permute.xlu0 %1097
      %1099 = vrot.lane.b32.xlu0 %v916, 8
      %v1100 = vpop.permute.xlu0 %1099
      %1111 = vrot.lane.b32.xlu0 %v1069, 16
      %v1112 = vpop.permute.xlu0 %1111
      %1113 = vrot.lane.b32.xlu0 %v1070, 16
      %v1114 = vpop.permute.xlu0 %1113
      %1115 = vrot.lane.b32.xlu0 %v1071, 16
      %v1116 = vpop.permute.xlu0 %1115
      %1117 = vrot.lane.b32.xlu0 %v1072, 16
      %v1118 = vpop.permute.xlu0 %1117
      %1119 = vrot.lane.b32.xlu0 %v1073, 16
      %v1120 = vpop.permute.xlu0 %1119
      %1121 = vrot.lane.b32.xlu0 %v1074, 16
      %v1122 = vpop.permute.xlu0 %1121
      %1123 = vrot.lane.b32.xlu0 %v1075, 16
      %v1124 = vpop.permute.xlu0 %1123
      %1125 = vrot.lane.b32.xlu0 %v1076, 16
      %v1126 = vpop.permute.xlu0 %1125
      %1127 = vrot.lane.b32.xlu0 %v1077, 16
      %v1128 = vpop.permute.xlu0 %1127
      %1129 = vrot.lane.b32.xlu0 %v1078, 16
      %v1130 = vpop.permute.xlu0 %1129
      %1141 = vrot.lane.b32.xlu0 %v1019, 24
      %v1142 = vpop.permute.xlu0 %1141
      %1143 = vrot.lane.b32.xlu0 %v1020, 24
      %v1144 = vpop.permute.xlu0 %1143
      %1145 = vrot.lane.b32.xlu0 %v1021, 24
      %v1146 = vpop.permute.xlu0 %1145
      %1147 = vrot.lane.b32.xlu0 %v1022, 24
      %v1148 = vpop.permute.xlu0 %1147
      %1149 = vrot.lane.b32.xlu0 %v1023, 24
      %v1150 = vpop.permute.xlu0 %1149
      %1151 = vrot.lane.b32.xlu0 %v1024, 24
      %v1152 = vpop.permute.xlu0 %1151
      %1153 = vrot.lane.b32.xlu0 %v1025, 24
      %v1154 = vpop.permute.xlu0 %1153
      %1155 = vrot.lane.b32.xlu0 %v1026, 24
      %v1156 = vpop.permute.xlu0 %1155
      %1157 = vrot.lane.b32.xlu0 %v1027, 24
      %v1158 = vpop.permute.xlu0 %1157
      %1159 = vrot.lane.b32.xlu0 %v1028, 24
      %v1160 = vpop.permute.xlu0 %1159
      %1161 = vrot.lane.b32.xlu0 %v908, 32
      %v1162 = vpop.permute.xlu0 %1161
      %1163 = vrot.lane.b32.xlu0 %v909, 32
      %v1164 = vpop.permute.xlu0 %1163
      %1165 = vrot.lane.b32.xlu0 %v910, 32
      %v1166 = vpop.permute.xlu0 %1165
      %1167 = vrot.lane.b32.xlu0 %v911, 32
      %v1168 = vpop.permute.xlu0 %1167
      %1169 = vrot.lane.b32.xlu0 %v912, 32
      %v1170 = vpop.permute.xlu0 %1169
      %1171 = vrot.lane.b32.xlu0 %v913, 32
      %v1172 = vpop.permute.xlu0 %1171
      %1173 = vrot.lane.b32.xlu0 %v914, 32
      %v1174 = vpop.permute.xlu0 %1173
      %1175 = vrot.lane.b32.xlu0 %v915, 32
      %v1176 = vpop.permute.xlu0 %1175
      %1177 = vrot.lane.b32.xlu0 %v916, 32
      %v1178 = vpop.permute.xlu0 %1177
      %1179 = vrot.lane.b32.xlu0 %v917, 32
      %v1180 = vpop.permute.xlu0 %1179
      %1182 = vrot.lane.b32.xlu0 %v1070, 40
      %v1183 = vpop.permute.xlu0 %1182
      %1184 = vrot.lane.b32.xlu0 %v1071, 40
      %v1185 = vpop.permute.xlu0 %1184
      %1186 = vrot.lane.b32.xlu0 %v1072, 40
      %v1187 = vpop.permute.xlu0 %1186
      %1188 = vrot.lane.b32.xlu0 %v1073, 40
      %v1189 = vpop.permute.xlu0 %1188
      %1190 = vrot.lane.b32.xlu0 %v1074, 40
      %v1191 = vpop.permute.xlu0 %1190
      %1192 = vrot.lane.b32.xlu0 %v1075, 40
      %v1193 = vpop.permute.xlu0 %1192
      %1194 = vrot.lane.b32.xlu0 %v1076, 40
      %v1195 = vpop.permute.xlu0 %1194
      %1196 = vrot.lane.b32.xlu0 %v1077, 40
      %v1197 = vpop.permute.xlu0 %1196
      %1198 = vrot.lane.b32.xlu0 %v1078, 40
      %v1199 = vpop.permute.xlu0 %1198
      %1200 = vrot.lane.b32.xlu0 %v1079, 40
      %v1201 = vpop.permute.xlu0 %1200
      %1203 = vrot.lane.b32.xlu0 %v1020, 48
      %v1204 = vpop.permute.xlu0 %1203
      %1205 = vrot.lane.b32.xlu0 %v1021, 48
      %v1206 = vpop.permute.xlu0 %1205
      %1207 = vrot.lane.b32.xlu0 %v1022, 48
      %v1208 = vpop.permute.xlu0 %1207
      %1209 = vrot.lane.b32.xlu0 %v1023, 48
      %v1210 = vpop.permute.xlu0 %1209
      %1211 = vrot.lane.b32.xlu0 %v1024, 48
      %v1212 = vpop.permute.xlu0 %1211
      %1213 = vrot.lane.b32.xlu0 %v1025, 48
      %v1214 = vpop.permute.xlu0 %1213
      %1215 = vrot.lane.b32.xlu0 %v1026, 48
      %v1216 = vpop.permute.xlu0 %1215
      %1217 = vrot.lane.b32.xlu0 %v1027, 48
      %v1218 = vpop.permute.xlu0 %1217
      %1219 = vrot.lane.b32.xlu0 %v1028, 48
      %v1220 = vpop.permute.xlu0 %1219
      %1221 = vrot.lane.b32.xlu0 %v1029, 48
      %v1222 = vpop.permute.xlu0 %1221
      %1223 = vrot.lane.b32.xlu0 %v909, 56
      %v1224 = vpop.permute.xlu0 %1223
      %1225 = vrot.lane.b32.xlu0 %v910, 56
      %v1226 = vpop.permute.xlu0 %1225
      %1227 = vrot.lane.b32.xlu0 %v911, 56
      %v1228 = vpop.permute.xlu0 %1227
      %1229 = vrot.lane.b32.xlu0 %v912, 56
      %v1230 = vpop.permute.xlu0 %1229
      %1231 = vrot.lane.b32.xlu0 %v913, 56
      %v1232 = vpop.permute.xlu0 %1231
      %1233 = vrot.lane.b32.xlu0 %v914, 56
      %v1234 = vpop.permute.xlu0 %1233
      %1235 = vrot.lane.b32.xlu0 %v915, 56
      %v1236 = vpop.permute.xlu0 %1235
      %1237 = vrot.lane.b32.xlu0 %v916, 56
      %v1238 = vpop.permute.xlu0 %1237
      %1239 = vrot.lane.b32.xlu0 %v917, 56
      %v1240 = vpop.permute.xlu0 %1239
      %1241 = vrot.lane.b32.xlu0 %v918, 56
      %v1242 = vpop.permute.xlu0 %1241
      %1244 = vrot.lane.b32.xlu0 %v1071, 64
      %v1245 = vpop.permute.xlu0 %1244
      %1246 = vrot.lane.b32.xlu0 %v1072, 64
      %v1247 = vpop.permute.xlu0 %1246
      %1248 = vrot.lane.b32.xlu0 %v1073, 64
      %v1249 = vpop.permute.xlu0 %1248
      %1250 = vrot.lane.b32.xlu0 %v1074, 64
      %v1251 = vpop.permute.xlu0 %1250
      %1252 = vrot.lane.b32.xlu0 %v1075, 64
      %v1253 = vpop.permute.xlu0 %1252
      %1254 = vrot.lane.b32.xlu0 %v1076, 64
      %v1255 = vpop.permute.xlu0 %1254
      %1256 = vrot.lane.b32.xlu0 %v1077, 64
      %v1257 = vpop.permute.xlu0 %1256
      %1258 = vrot.lane.b32.xlu0 %v1078, 64
      %v1259 = vpop.permute.xlu0 %1258
      %1260 = vrot.lane.b32.xlu0 %v1079, 64
      %v1261 = vpop.permute.xlu0 %1260
      %1262 = vrot.lane.b32.xlu0 %v1080, 64
      %v1263 = vpop.permute.xlu0 %1262
      %vm1264 = vcmask 64512
      %v1267 = vsel %vm1264, %v1018, %v1082
      %v1270 = vsel %vm1264, %v1019, %v1084
      %v1273 = vsel %vm1264, %v1020, %v1086
      %v1276 = vsel %vm1264, %v1021, %v1088
      %v1279 = vsel %vm1264, %v1022, %v1090
      %v1282 = vsel %vm1264, %v1023, %v1092
      %v1285 = vsel %vm1264, %v1024, %v1094
      %v1288 = vsel %vm1264, %v1025, %v1096
      %v1291 = vsel %vm1264, %v1026, %v1098
      %v1294 = vsel %vm1264, %v1027, %v1100
      %vm1295 = vcmask 130048
      %v1297 = vsel %vm1295, %v1267, %v1112
      %v1299 = vsel %vm1295, %v1270, %v1114
      %v1301 = vsel %vm1295, %v1273, %v1116
      %v1303 = vsel %vm1295, %v1276, %v1118
      %v1305 = vsel %vm1295, %v1279, %v1120
      %v1307 = vsel %vm1295, %v1282, %v1122
      %v1309 = vsel %vm1295, %v1285, %v1124
      %v1311 = vsel %vm1295, %v1288, %v1126
      %v1313 = vsel %vm1295, %v1291, %v1128
      %v1315 = vsel %vm1295, %v1294, %v1130
      %vm1316 = vcmask 195584
      %v1318 = vsel %vm1316, %v1297, %v1142
      %v1320 = vsel %vm1316, %v1299, %v1144
      %v1322 = vsel %vm1316, %v1301, %v1146
      %v1324 = vsel %vm1316, %v1303, %v1148
      %v1326 = vsel %vm1316, %v1305, %v1150
      %v1328 = vsel %vm1316, %v1307, %v1152
      %v1330 = vsel %vm1316, %v1309, %v1154
      %v1332 = vsel %vm1316, %v1311, %v1156
      %v1334 = vsel %vm1316, %v1313, %v1158
      %v1336 = vsel %vm1316, %v1315, %v1160
      %vm1337 = vcmask 261120
      %v1339 = vsel %vm1337, %v1318, %v1162
      %v1341 = vsel %vm1337, %v1320, %v1164
      %v1343 = vsel %vm1337, %v1322, %v1166
      %v1345 = vsel %vm1337, %v1324, %v1168
      %v1347 = vsel %vm1337, %v1326, %v1170
      %v1349 = vsel %vm1337, %v1328, %v1172
      %v1351 = vsel %vm1337, %v1330, %v1174
      %v1353 = vsel %vm1337, %v1332, %v1176
      %v1355 = vsel %vm1337, %v1334, %v1178
      %v1357 = vsel %vm1337, %v1336, %v1180
      %vm1358 = vcmask 326656
      %v1360 = vsel %vm1358, %v1339, %v1183
      %v1362 = vsel %vm1358, %v1341, %v1185
      %v1364 = vsel %vm1358, %v1343, %v1187
      %v1366 = vsel %vm1358, %v1345, %v1189
      %v1368 = vsel %vm1358, %v1347, %v1191
      %v1370 = vsel %vm1358, %v1349, %v1193
      %v1372 = vsel %vm1358, %v1351, %v1195
      %v1374 = vsel %vm1358, %v1353, %v1197
      %v1376 = vsel %vm1358, %v1355, %v1199
      %v1378 = vsel %vm1358, %v1357, %v1201
      %vm1379 = vcmask 392192
      %v1381 = vsel %vm1379, %v1360, %v1204
      %v1383 = vsel %vm1379, %v1362, %v1206
      %v1385 = vsel %vm1379, %v1364, %v1208
      %v1387 = vsel %vm1379, %v1366, %v1210
      %v1389 = vsel %vm1379, %v1368, %v1212
      %v1391 = vsel %vm1379, %v1370, %v1214
      %v1393 = vsel %vm1379, %v1372, %v1216
      %v1395 = vsel %vm1379, %v1374, %v1218
      %v1397 = vsel %vm1379, %v1376, %v1220
      %v1399 = vsel %vm1379, %v1378, %v1222
      %vm1400 = vcmask 457728
      %v1402 = vsel %vm1400, %v1381, %v1224
      %v1404 = vsel %vm1400, %v1383, %v1226
      %v1406 = vsel %vm1400, %v1385, %v1228
      %v1408 = vsel %vm1400, %v1387, %v1230
      %v1410 = vsel %vm1400, %v1389, %v1232
      %v1412 = vsel %vm1400, %v1391, %v1234
      %v1414 = vsel %vm1400, %v1393, %v1236
      %v1416 = vsel %vm1400, %v1395, %v1238
      %v1418 = vsel %vm1400, %v1397, %v1240
      %v1420 = vsel %vm1400, %v1399, %v1242
      %vm1421 = vcmask 523264
      %v1423 = vsel %vm1421, %v1402, %v1245
      %v1425 = vsel %vm1421, %v1404, %v1247
      %v1427 = vsel %vm1421, %v1406, %v1249
      %v1429 = vsel %vm1421, %v1408, %v1251
      %v1431 = vsel %vm1421, %v1410, %v1253
      %v1433 = vsel %vm1421, %v1412, %v1255
      %v1435 = vsel %vm1421, %v1414, %v1257
      %v1437 = vsel %vm1421, %v1416, %v1259
      %v1439 = vsel %vm1421, %v1418, %v1261
      %v1441 = vsel %vm1421, %v1420, %v1263
      %v1442 = vld [vmem:[%s5] sm:$0xf]
      %v1443 = vld [vmem:[%s5 + $0x4] sm:$0xf]
      %v1444 = vld [vmem:[%s5 + $0x8] sm:$0xf]
      %v1445 = vld [vmem:[%s5 + $0xc] sm:$0xf]
      %v1446 = vld [vmem:[%s5 + $0x10] sm:$0xf]
      %v1447 = vld [vmem:[%s5 + $0x14] sm:$0xf]
      %v1448 = vld [vmem:[%s5 + $0x18] sm:$0xf]
      %v1449 = vld [vmem:[%s5 + $0x1c] sm:$0xf]
      %v1450 = vld [vmem:[%s5 + $0x20] sm:$0xf]
      %v1460 = vunpack.c.l.b16 %v1442
      %v1461 = vunpack.c.l.b16 %v1443
      %v1462 = vunpack.c.l.b16 %v1444
      %v1463 = vunpack.c.l.b16 %v1445
      %v1464 = vunpack.c.l.b16 %v1446
      %v1465 = vunpack.c.l.b16 %v1447
      %v1466 = vunpack.c.l.b16 %v1448
      %v1467 = vunpack.c.l.b16 %v1449
      %v1468 = vunpack.c.l.b16 %v1450
      %v1469 = vpack.c.b16 %v1461, %v1460
      %v1470 = vpack.c.b16 %v1463, %v1462
      %v1471 = vpack.c.b16 %v1465, %v1464
      %v1472 = vpack.c.b16 %v1467, %v1466
      %v1473 = vpack.c.b16 %v1468, %v1468
      %vm1478 = vcmask 588800
      %v1479 = vsel %vm1478, %v1423, 0
      %v1481 = vsel %vm1478, %v1425, 0
      %v1483 = vsel %vm1478, %v1427, 0
      %v1485 = vsel %vm1478, %v1429, 0
      %v1487 = vsel %vm1478, %v1431, 0
      %v1489 = vsel %vm1478, %v1433, 0
      %v1491 = vsel %vm1478, %v1435, 0
      %v1493 = vsel %vm1478, %v1437, 0
      %v1495 = vsel %vm1478, %v1439, 0
      %v1497 = vsel %vm1478, %v1441, 0
      %vm1499 = vcmask 1043456
      %v1501 = vsel %vm1499, %v1473, 0
      %1503 = vmatpush.bf16.msra.mxu0 0
      %1504 = vmatpush.bf16.msra.mxu0 0
      %1505 = vmatpush.bf16.msra.mxu0 0
      %1506 = vmatpush.bf16.msra.mxu0 %v1501
      %1507 = vmatpush.bf16.msra.mxu0 %v1472
      %1508 = vmatpush.bf16.msra.mxu0 %v1471
      %1509 = vmatpush.bf16.msra.mxu0 %v1470
      %1510 = vmatpush.bf16.msra.mxu0 %v1469
      %1511 = vmatmul.bf16.gmra.mxu0 %v1479
      %v1512 = vpop.f32.mrf.mxu0
      %v1513 = vadd.f32 0.0, %v1512
      %v1514 = vpop.f32.mrf.mxu0
      %v1515 = vadd.f32 0.0, %v1514
      %1516 = vmatmul.bf16.gmra.mxu0 %v1481
      %v1517 = vpop.f32.mrf.mxu0
      %v1518 = vadd.f32 0.0, %v1517
      %v1519 = vpop.f32.mrf.mxu0
      %v1520 = vadd.f32 0.0, %v1519
      %1521 = vmatmul.bf16.gmra.mxu0 %v1483
      %v1522 = vpop.f32.mrf.mxu0
      %v1523 = vadd.f32 0.0, %v1522
      %v1524 = vpop.f32.mrf.mxu0
      %v1525 = vadd.f32 0.0, %v1524
      %1526 = vmatmul.bf16.gmra.mxu0 %v1485
      %v1527 = vpop.f32.mrf.mxu0
      %v1528 = vadd.f32 0.0, %v1527
      %v1529 = vpop.f32.mrf.mxu0
      %v1530 = vadd.f32 0.0, %v1529
      %1531 = vmatmul.bf16.gmra.mxu0 %v1487
      %v1532 = vpop.f32.mrf.mxu0
      %v1533 = vadd.f32 0.0, %v1532
      %v1534 = vpop.f32.mrf.mxu0
      %v1535 = vadd.f32 0.0, %v1534
      %1536 = vmatmul.bf16.gmra.mxu0 %v1489
      %v1537 = vpop.f32.mrf.mxu0
      %v1538 = vadd.f32 0.0, %v1537
      %v1539 = vpop.f32.mrf.mxu0
      %v1540 = vadd.f32 0.0, %v1539
      %1541 = vmatmul.bf16.gmra.mxu0 %v1491
      %v1542 = vpop.f32.mrf.mxu0
      %v1543 = vadd.f32 0.0, %v1542
      %v1544 = vpop.f32.mrf.mxu0
      %v1545 = vadd.f32 0.0, %v1544
      %1546 = vmatmul.bf16.gmra.mxu0 %v1493
      %v1547 = vpop.f32.mrf.mxu0
      %v1548 = vadd.f32 0.0, %v1547
      %v1549 = vpop.f32.mrf.mxu0
      %v1550 = vadd.f32 0.0, %v1549
      %1551 = vmatmul.bf16.gmra.mxu0 %v1495
      %v1552 = vpop.f32.mrf.mxu0
      %v1553 = vadd.f32 0.0, %v1552
      %v1554 = vpop.f32.mrf.mxu0
      %v1555 = vadd.f32 0.0, %v1554
      %1556 = vmatmul.bf16.gmra.mxu0 %v1497
      %v1557 = vpop.f32.mrf.mxu0
      %v1558 = vadd.f32 0.0, %v1557
      %v1559 = vpop.f32.mrf.mxu0
      %v1560 = vadd.f32 0.0, %v1559
      %1561 = vdwg.mxu0
      %v1562 = vld [vmem:[%s6] sm:$0x1]
      %v1564 = vperm.slane %v1562, 0
      %v1566 = vmul.f32 %v1513, %v1564
      %v1567 = vmul.f32 %v1515, %v1564
      %v1568 = vmul.f32 %v1518, %v1564
      %v1569 = vmul.f32 %v1520, %v1564
      %v1570 = vmul.f32 %v1523, %v1564
      %v1571 = vmul.f32 %v1525, %v1564
      %v1572 = vmul.f32 %v1528, %v1564
      %v1573 = vmul.f32 %v1530, %v1564
      %v1574 = vmul.f32 %v1533, %v1564
      %v1575 = vmul.f32 %v1535, %v1564
      %v1576 = vmul.f32 %v1538, %v1564
      %v1577 = vmul.f32 %v1540, %v1564
      %v1578 = vmul.f32 %v1543, %v1564
      %v1579 = vmul.f32 %v1545, %v1564
      %v1580 = vmul.f32 %v1548, %v1564
      %v1581 = vmul.f32 %v1550, %v1564
      %v1582 = vmul.f32 %v1553, %v1564
      %v1583 = vmul.f32 %v1555, %v1564
      %v1584 = vmul.f32 %v1558, %v1564
      %v1585 = vmul.f32 %v1560, %v1564
      %v1586 = vld [vmem:[%s7] sm:$0x1]
      %v1588 = vperm.slane %v1586, 0
      %v1590 = vadd.f32 %v1566, %v1588
      %v1591 = vadd.f32 %v1567, %v1588
      %v1592 = vadd.f32 %v1568, %v1588
      %v1593 = vadd.f32 %v1569, %v1588
      %v1594 = vadd.f32 %v1570, %v1588
      %v1595 = vadd.f32 %v1571, %v1588
      %v1596 = vadd.f32 %v1572, %v1588
      %v1597 = vadd.f32 %v1573, %v1588
      %v1598 = vadd.f32 %v1574, %v1588
      %v1599 = vadd.f32 %v1575, %v1588
      %v1600 = vadd.f32 %v1576, %v1588
      %v1601 = vadd.f32 %v1577, %v1588
      %v1602 = vadd.f32 %v1578, %v1588
      %v1603 = vadd.f32 %v1579, %v1588
      %v1604 = vadd.f32 %v1580, %v1588
      %v1605 = vadd.f32 %v1581, %v1588
      %v1606 = vadd.f32 %v1582, %v1588
      %v1607 = vadd.f32 %v1583, %v1588
      %v1608 = vadd.f32 %v1584, %v1588
      %v1609 = vadd.f32 %v1585, %v1588
      %v1610 = vmax.f32 %v1590, 0.0
      %v1611 = vmax.f32 %v1591, 0.0
      %v1612 = vmax.f32 %v1592, 0.0
      %v1613 = vmax.f32 %v1593, 0.0
      %v1614 = vmax.f32 %v1594, 0.0
      %v1615 = vmax.f32 %v1595, 0.0
      %v1616 = vmax.f32 %v1596, 0.0
      %v1617 = vmax.f32 %v1597, 0.0
      %v1618 = vmax.f32 %v1598, 0.0
      %v1619 = vmax.f32 %v1599, 0.0
      %v1620 = vmax.f32 %v1600, 0.0
      %v1621 = vmax.f32 %v1601, 0.0
      %v1622 = vmax.f32 %v1602, 0.0
      %v1623 = vmax.f32 %v1603, 0.0
      %v1624 = vmax.f32 %v1604, 0.0
      %v1625 = vmax.f32 %v1605, 0.0
      %v1626 = vmax.f32 %v1606, 0.0
      %v1627 = vmax.f32 %v1607, 0.0
      %v1628 = vmax.f32 %v1608, 0.0
      %v1629 = vmax.f32 %v1609, 0.0
      %v1630 = vpack.c.bf16 %v1610, %v1610
      %v1631 = vpack.c.bf16 %v1611, %v1611
      %v1632 = vpack.c.bf16 %v1612, %v1612
      %v1633 = vpack.c.bf16 %v1613, %v1613
      %v1634 = vpack.c.bf16 %v1614, %v1614
      %v1635 = vpack.c.bf16 %v1615, %v1615
      %v1636 = vpack.c.bf16 %v1616, %v1616
      %v1637 = vpack.c.bf16 %v1617, %v1617
      %v1638 = vpack.c.bf16 %v1618, %v1618
      %v1639 = vpack.c.bf16 %v1619, %v1619
      %v1640 = vpack.c.bf16 %v1620, %v1620
      %v1641 = vpack.c.bf16 %v1621, %v1621
      %v1642 = vpack.c.bf16 %v1622, %v1622
      %v1643 = vpack.c.bf16 %v1623, %v1623
      %v1644 = vpack.c.bf16 %v1624, %v1624
      %v1645 = vpack.c.bf16 %v1625, %v1625
      %v1646 = vpack.c.bf16 %v1626, %v1626
      %v1647 = vpack.c.bf16 %v1627, %v1627
      %v1648 = vpack.c.bf16 %v1628, %v1628
      %v1649 = vpack.c.bf16 %v1629, %v1629
      %v1650 = vstv %s750
      %vm1651 = vcmp.eq.s32.totalorder %v1650, 1
      %v1652 = vstv %s765
      %vm1653 = vcmp.eq.s32.totalorder %v1652, 1
      %v1654 = vsel %vm1651, 1, 0
      %v1655 = vsel %vm1653, 1, 0
      %v1656 = vcvt.s32.f32 %v1654
      %v1657 = vcvt.s32.f32 1
      %v1658 = vcvt.s32.f32 %v1655
      %v1659 = vpack.c.bf16 %v1656, %v1656
      %v1660 = vpack.c.bf16 %v1657, %v1657
      %v1661 = vpack.c.bf16 %v1658, %v1658
      %v1662 = vunpack.c.l.bf16 %v1630
      %v1663 = vunpack.c.l.bf16 %v1631
      %v1664 = vunpack.c.l.bf16 %v1632
      %v1665 = vunpack.c.l.bf16 %v1633
      %v1666 = vunpack.c.l.bf16 %v1634
      %v1667 = vunpack.c.l.bf16 %v1635
      %v1668 = vunpack.c.l.bf16 %v1636
      %v1669 = vunpack.c.l.bf16 %v1637
      %v1670 = vunpack.c.l.bf16 %v1638
      %v1671 = vunpack.c.l.bf16 %v1639
      %v1672 = vunpack.c.l.bf16 %v1640
      %v1673 = vunpack.c.l.bf16 %v1641
      %v1674 = vunpack.c.l.bf16 %v1642
      %v1675 = vunpack.c.l.bf16 %v1643
      %v1676 = vunpack.c.l.bf16 %v1644
      %v1677 = vunpack.c.l.bf16 %v1645
      %v1678 = vunpack.c.l.bf16 %v1646
      %v1679 = vunpack.c.l.bf16 %v1647
      %v1680 = vunpack.c.l.bf16 %v1648
      %v1681 = vunpack.c.l.bf16 %v1649
      %v1682 = vunpack.c.l.bf16 %v1659
      %v1683 = vunpack.c.l.bf16 %v1660
      %v1684 = vunpack.c.l.bf16 %v1661
      %v1685 = vmul.f32 %v1662, %v1682
      %v1686 = vmul.f32 %v1663, %v1682
      %v1687 = vmul.f32 %v1664, %v1683
      %v1688 = vmul.f32 %v1665, %v1683
      %v1689 = vmul.f32 %v1666, %v1683
      %v1690 = vmul.f32 %v1667, %v1683
      %v1691 = vmul.f32 %v1668, %v1683
      %v1692 = vmul.f32 %v1669, %v1683
      %v1693 = vmul.f32 %v1670, %v1683
      %v1694 = vmul.f32 %v1671, %v1683
      %v1695 = vmul.f32 %v1672, %v1683
      %v1696 = vmul.f32 %v1673, %v1683
      %v1697 = vmul.f32 %v1674, %v1683
      %v1698 = vmul.f32 %v1675, %v1683
      %v1699 = vmul.f32 %v1676, %v1683
      %v1700 = vmul.f32 %v1677, %v1683
      %v1701 = vmul.f32 %v1678, %v1683
      %v1702 = vmul.f32 %v1679, %v1683
      %v1703 = vmul.f32 %v1680, %v1684
      %v1704 = vmul.f32 %v1681, %v1684
      %v1705 = vpack.c.bf16 %v1685, %v1685
      %v1706 = vpack.c.bf16 %v1686, %v1686
      %v1707 = vpack.c.bf16 %v1687, %v1687
      %v1708 = vpack.c.bf16 %v1688, %v1688
      %v1709 = vpack.c.bf16 %v1689, %v1689
      %v1710 = vpack.c.bf16 %v1690, %v1690
      %v1711 = vpack.c.bf16 %v1691, %v1691
      %v1712 = vpack.c.bf16 %v1692, %v1692
      %v1713 = vpack.c.bf16 %v1693, %v1693
      %v1714 = vpack.c.bf16 %v1694, %v1694
      %v1715 = vpack.c.bf16 %v1695, %v1695
      %v1716 = vpack.c.bf16 %v1696, %v1696
      %v1717 = vpack.c.bf16 %v1697, %v1697
      %v1718 = vpack.c.bf16 %v1698, %v1698
      %v1719 = vpack.c.bf16 %v1699, %v1699
      %v1720 = vpack.c.bf16 %v1700, %v1700
      %v1721 = vpack.c.bf16 %v1701, %v1701
      %v1722 = vpack.c.bf16 %v1702, %v1702
      %v1723 = vpack.c.bf16 %v1703, %v1703
      %v1724 = vpack.c.bf16 %v1704, %v1704
      %v1745 = vunpack.c.l.b16 %v1705
      %v1746 = vunpack.c.l.b16 %v1706
      %v1747 = vunpack.c.l.b16 %v1707
      %v1748 = vunpack.c.l.b16 %v1708
      %v1749 = vunpack.c.l.b16 %v1709
      %v1750 = vunpack.c.l.b16 %v1710
      %v1751 = vunpack.c.l.b16 %v1711
      %v1752 = vunpack.c.l.b16 %v1712
      %v1753 = vunpack.c.l.b16 %v1713
      %v1754 = vunpack.c.l.b16 %v1714
      %v1755 = vunpack.c.l.b16 %v1715
      %v1756 = vunpack.c.l.b16 %v1716
      %v1757 = vunpack.c.l.b16 %v1717
      %v1758 = vunpack.c.l.b16 %v1718
      %v1759 = vunpack.c.l.b16 %v1719
      %v1760 = vunpack.c.l.b16 %v1720
      %v1761 = vunpack.c.l.b16 %v1721
      %v1762 = vunpack.c.l.b16 %v1722
      %v1763 = vunpack.c.l.b16 %v1723
      %v1764 = vunpack.c.l.b16 %v1724
      %v1765 = vpack.c.b16 %v1746, %v1745
      %v1766 = vpack.c.b16 %v1748, %v1747
      %v1767 = vpack.c.b16 %v1750, %v1749
      %v1768 = vpack.c.b16 %v1752, %v1751
      %v1769 = vpack.c.b16 %v1754, %v1753
      %v1770 = vpack.c.b16 %v1756, %v1755
      %v1771 = vpack.c.b16 %v1758, %v1757
      %v1772 = vpack.c.b16 %v1760, %v1759
      %v1773 = vpack.c.b16 %v1762, %v1761
      %v1774 = vpack.c.b16 %v1764, %v1763
      %v1776 = vshrl.u32 %v1765, 16
      %v1778 = vrot.slane %v1776, 7
      %v1779 = vshll.u32 %v1765, 16
      %v1781 = vor.u32 %v1778, %v1779
      %v1783 = vshrl.u32 %v1766, 16
      %v1785 = vrot.slane %v1783, 7
      %v1786 = vshll.u32 %v1766, 16
      %v1788 = vor.u32 %v1785, %v1786
      %v1790 = vshrl.u32 %v1767, 16
      %v1792 = vrot.slane %v1790, 7
      %v1793 = vshll.u32 %v1767, 16
      %v1795 = vor.u32 %v1792, %v1793
      %v1797 = vshrl.u32 %v1768, 16
      %v1799 = vrot.slane %v1797, 7
      %v1800 = vshll.u32 %v1768, 16
      %v1802 = vor.u32 %v1799, %v1800
      %v1804 = vshrl.u32 %v1769, 16
      %v1806 = vrot.slane %v1804, 7
      %v1807 = vshll.u32 %v1769, 16
      %v1809 = vor.u32 %v1806, %v1807
      %v1811 = vshrl.u32 %v1770, 16
      %v1813 = vrot.slane %v1811, 7
      %v1814 = vshll.u32 %v1770, 16
      %v1816 = vor.u32 %v1813, %v1814
      %v1818 = vshrl.u32 %v1771, 16
      %v1820 = vrot.slane %v1818, 7
      %v1821 = vshll.u32 %v1771, 16
      %v1823 = vor.u32 %v1820, %v1821
      %v1825 = vshrl.u32 %v1772, 16
      %v1827 = vrot.slane %v1825, 7
      %v1828 = vshll.u32 %v1772, 16
      %v1830 = vor.u32 %v1827, %v1828
      %v1832 = vshrl.u32 %v1773, 16
      %v1834 = vrot.slane %v1832, 7
      %v1835 = vshll.u32 %v1773, 16
      %v1837 = vor.u32 %v1834, %v1835
      %v1839 = vshrl.u32 %v1774, 16
      %v1841 = vrot.slane %v1839, 7
      %v1842 = vshll.u32 %v1774, 16
      %v1844 = vor.u32 %v1841, %v1842
      %v1855 = vsel %vm1017, 0, %v1781
      %v1856 = vsel %vm1017, 0, %v1788
      %v1857 = vsel %vm1017, 0, %v1795
      %v1858 = vsel %vm1017, 0, %v1802
      %v1859 = vsel %vm1017, 0, %v1809
      %v1860 = vsel %vm1017, 0, %v1816
      %v1861 = vsel %vm1017, 0, %v1823
      %v1862 = vsel %vm1017, 0, %v1830
      %v1863 = vsel %vm1017, 0, %v1837
      %v1864 = vsel %vm1017, 0, %v1844
      %v1865 = vrot.slane %v1779, 1
      %v1866 = vor.u32 %v1776, %v1865
      %v1867 = vrot.slane %v1786, 1
      %v1868 = vor.u32 %v1783, %v1867
      %v1869 = vrot.slane %v1793, 1
      %v1870 = vor.u32 %v1790, %v1869
      %v1871 = vrot.slane %v1800, 1
      %v1872 = vor.u32 %v1797, %v1871
      %v1873 = vrot.slane %v1807, 1
      %v1874 = vor.u32 %v1804, %v1873
      %v1875 = vrot.slane %v1814, 1
      %v1876 = vor.u32 %v1811, %v1875
      %v1877 = vrot.slane %v1821, 1
      %v1878 = vor.u32 %v1818, %v1877
      %v1879 = vrot.slane %v1828, 1
      %v1880 = vor.u32 %v1825, %v1879
      %v1881 = vrot.slane %v1835, 1
      %v1882 = vor.u32 %v1832, %v1881
      %v1883 = vrot.slane %v1842, 1
      %v1884 = vor.u32 %v1839, %v1883
      %v1895 = vsel %vm1068, %v1866, 0
      %v1896 = vsel %vm1068, %v1868, 0
      %v1897 = vsel %vm1068, %v1870, 0
      %v1898 = vsel %vm1068, %v1872, 0
      %v1899 = vsel %vm1068, %v1874, 0
      %v1900 = vsel %vm1068, %v1876, 0
      %v1901 = vsel %vm1068, %v1878, 0
      %v1902 = vsel %vm1068, %v1880, 0
      %v1903 = vsel %vm1068, %v1882, 0
      %v1904 = vsel %vm1068, %v1884, 0
      %v1915 = vld [vmem:[%s8] sm:$0xf]
      %v1916 = vld [vmem:[%s8 + $0x4] sm:$0xf]
      %v1917 = vld [vmem:[%s8 + $0x8] sm:$0xf]
      %v1918 = vld [vmem:[%s8 + $0xc] sm:$0xf]
      %v1919 = vld [vmem:[%s8 + $0x10] sm:$0xf]
      %v1920 = vld [vmem:[%s8 + $0x14] sm:$0xf]
      %v1921 = vld [vmem:[%s8 + $0x18] sm:$0xf]
      %v1922 = vld [vmem:[%s8 + $0x1c] sm:$0xf]
      %v1923 = vld [vmem:[%s8 + $0x20] sm:$0xf]
      %v1924 = vld [vmem:[%s8 + $0x24] sm:$0xf]
      %v1925 = vld [vmem:[%s8 + $0x28] sm:$0xf]
      %v1926 = vld [vmem:[%s8 + $0x2c] sm:$0xf]
      %v1927 = vld [vmem:[%s8 + $0x30] sm:$0xf]
      %v1928 = vld [vmem:[%s8 + $0x34] sm:$0xf]
      %v1929 = vld [vmem:[%s8 + $0x38] sm:$0xf]
      %v1930 = vld [vmem:[%s8 + $0x3c] sm:$0xf]
      %v1931 = vld [vmem:[%s8 + $0x40] sm:$0xf]
      %v1932 = vld [vmem:[%s8 + $0x44] sm:$0xf]
      %v1933 = vld [vmem:[%s8 + $0x48] sm:$0xf]
      %v1934 = vld [vmem:[%s8 + $0x4c] sm:$0xf]
      %v1935 = vld [vmem:[%s8 + $0x50] sm:$0xf]
      %v1936 = vld [vmem:[%s8 + $0x54] sm:$0xf]
      %v1937 = vld [vmem:[%s8 + $0x58] sm:$0xf]
      %v1938 = vld [vmem:[%s8 + $0x5c] sm:$0xf]
      %v1939 = vld [vmem:[%s8 + $0x60] sm:$0xf]
      %v1940 = vld [vmem:[%s8 + $0x64] sm:$0xf]
      %v1941 = vld [vmem:[%s8 + $0x68] sm:$0xf]
      %v1942 = vld [vmem:[%s8 + $0x6c] sm:$0xf]
      %v1943 = vld [vmem:[%s8 + $0x70] sm:$0xf]
      %v1944 = vld [vmem:[%s8 + $0x74] sm:$0xf]
      %v1945 = vld [vmem:[%s8 + $0x78] sm:$0xf]
      %v1946 = vld [vmem:[%s8 + $0x7c] sm:$0xf]
      %v1947 = vld [vmem:[%s8 + $0x80] sm:$0xf]
      %v1948 = vld [vmem:[%s8 + $0x84] sm:$0xf]
      %v1949 = vld [vmem:[%s8 + $0x88] sm:$0xf]
      %v1950 = vld [vmem:[%s8 + $0x8c] sm:$0xf]
      %v1951 = vld [vmem:[%s8 + $0x90] sm:$0xf]
      %v1952 = vld [vmem:[%s8 + $0x94] sm:$0xf]
      %v1953 = vld [vmem:[%s8 + $0x98] sm:$0xf]
      %v1954 = vld [vmem:[%s8 + $0x9c] sm:$0xf]
      %v1955 = vld [vmem:[%s8 + $0xa0] sm:$0xf]
      %v1956 = vld [vmem:[%s8 + $0xa4] sm:$0xf]
      %v1957 = vld [vmem:[%s8 + $0xa8] sm:$0xf]
      %v1958 = vld [vmem:[%s8 + $0xac] sm:$0xf]
      %v1959 = vld [vmem:[%s8 + $0xb0] sm:$0xf]
      %v1960 = vld [vmem:[%s8 + $0xb4] sm:$0xf]
      %v1961 = vld [vmem:[%s8 + $0xb8] sm:$0xf]
      %v1962 = vld [vmem:[%s8 + $0xbc] sm:$0xf]
      %v1963 = vld [vmem:[%s8 + $0xc0] sm:$0xf]
      %v1964 = vld [vmem:[%s8 + $0xc4] sm:$0xf]
      %v1965 = vld [vmem:[%s8 + $0xc8] sm:$0xf]
      %v1966 = vld [vmem:[%s8 + $0xcc] sm:$0xf]
      %v1967 = vld [vmem:[%s8 + $0xd0] sm:$0xf]
      %v1968 = vld [vmem:[%s8 + $0xd4] sm:$0xf]
      %v1969 = vld [vmem:[%s8 + $0xd8] sm:$0xf]
      %v1970 = vld [vmem:[%s8 + $0xdc] sm:$0xf]
      %v1971 = vld [vmem:[%s8 + $0xe0] sm:$0xf]
      %v1972 = vld [vmem:[%s8 + $0xe4] sm:$0xf]
      %v1973 = vld [vmem:[%s8 + $0xe8] sm:$0xf]
      %v1974 = vld [vmem:[%s8 + $0xec] sm:$0xf]
      %v1975 = vld [vmem:[%s8 + $0xf0] sm:$0xf]
      %v1976 = vld [vmem:[%s8 + $0xf4] sm:$0xf]
      %v1977 = vld [vmem:[%s8 + $0xf8] sm:$0xf]
      %v1978 = vld [vmem:[%s8 + $0xfc] sm:$0xf]
      %v1979 = vld [vmem:[%s8 + $0x100] sm:$0xf]
      %v1980 = vld [vmem:[%s8 + $0x104] sm:$0xf]
      %v1981 = vld [vmem:[%s8 + $0x108] sm:$0xf]
      %v1982 = vld [vmem:[%s8 + $0x10c] sm:$0xf]
      %v1983 = vld [vmem:[%s8 + $0x110] sm:$0xf]
      %v1984 = vld [vmem:[%s8 + $0x114] sm:$0xf]
      %v1985 = vld [vmem:[%s8 + $0x118] sm:$0xf]
      %v1986 = vld [vmem:[%s8 + $0x11c] sm:$0xf]
      %v1987 = vld [vmem:[%s8 + $0x120] sm:$0xf]
      %v1988 = vld [vmem:[%s8 + $0x124] sm:$0xf]
      %v1989 = vld [vmem:[%s8 + $0x128] sm:$0xf]
      %v1990 = vld [vmem:[%s8 + $0x12c] sm:$0xf]
      %v1991 = vld [vmem:[%s8 + $0x130] sm:$0xf]
      %v1992 = vld [vmem:[%s8 + $0x134] sm:$0xf]
      %v1993 = vld [vmem:[%s8 + $0x138] sm:$0xf]
      %v1994 = vld [vmem:[%s8 + $0x13c] sm:$0xf]
      %v1995 = vld [vmem:[%s8 + $0x140] sm:$0xf]
      %v1996 = vld [vmem:[%s8 + $0x144] sm:$0xf]
      %v1997 = vld [vmem:[%s8 + $0x148] sm:$0xf]
      %v1998 = vld [vmem:[%s8 + $0x14c] sm:$0xf]
      %v1999 = vld [vmem:[%s8 + $0x150] sm:$0xf]
      %v2000 = vld [vmem:[%s8 + $0x154] sm:$0xf]
      %v2001 = vld [vmem:[%s8 + $0x158] sm:$0xf]
      %v2002 = vld [vmem:[%s8 + $0x15c] sm:$0xf]
      %v2003 = vld [vmem:[%s8 + $0x160] sm:$0xf]
      %v2004 = vld [vmem:[%s8 + $0x164] sm:$0xf]
      %v2005 = vld [vmem:[%s8 + $0x168] sm:$0xf]
      %v2006 = vld [vmem:[%s8 + $0x16c] sm:$0xf]
      %v2007 = vld [vmem:[%s8 + $0x170] sm:$0xf]
      %v2008 = vld [vmem:[%s8 + $0x174] sm:$0xf]
      %v2009 = vld [vmem:[%s8 + $0x178] sm:$0xf]
      %v2010 = vld [vmem:[%s8 + $0x17c] sm:$0xf]
      %v2011 = vld [vmem:[%s8 + $0x180] sm:$0xf]
      %v2012 = vld [vmem:[%s8 + $0x184] sm:$0xf]
      %v2013 = vld [vmem:[%s8 + $0x188] sm:$0xf]
      %v2014 = vld [vmem:[%s8 + $0x18c] sm:$0xf]
      %v2015 = vld [vmem:[%s8 + $0x190] sm:$0xf]
      %v2016 = vld [vmem:[%s8 + $0x194] sm:$0xf]
      %v2017 = vld [vmem:[%s8 + $0x198] sm:$0xf]
      %v2018 = vld [vmem:[%s8 + $0x19c] sm:$0xf]
      %v2019 = vld [vmem:[%s8 + $0x1a0] sm:$0xf]
      %v2020 = vld [vmem:[%s8 + $0x1a4] sm:$0xf]
      %v2021 = vld [vmem:[%s8 + $0x1a8] sm:$0xf]
      %v2022 = vld [vmem:[%s8 + $0x1ac] sm:$0xf]
      %v2023 = vld [vmem:[%s8 + $0x1b0] sm:$0xf]
      %v2024 = vld [vmem:[%s8 + $0x1b4] sm:$0xf]
      %v2025 = vld [vmem:[%s8 + $0x1b8] sm:$0xf]
      %v2026 = vld [vmem:[%s8 + $0x1bc] sm:$0xf]
      %v2027 = vld [vmem:[%s8 + $0x1c0] sm:$0xf]
      %v2028 = vld [vmem:[%s8 + $0x1c4] sm:$0xf]
      %v2029 = vld [vmem:[%s8 + $0x1c8] sm:$0xf]
      %v2030 = vld [vmem:[%s8 + $0x1cc] sm:$0xf]
      %v2031 = vld [vmem:[%s8 + $0x1d0] sm:$0xf]
      %v2032 = vld [vmem:[%s8 + $0x1d4] sm:$0xf]
      %v2033 = vld [vmem:[%s8 + $0x1d8] sm:$0xf]
      %v2034 = vld [vmem:[%s8 + $0x1dc] sm:$0xf]
      %v2035 = vld [vmem:[%s8 + $0x1e0] sm:$0xf]
      %v2036 = vld [vmem:[%s8 + $0x1e4] sm:$0xf]
      %v2037 = vld [vmem:[%s8 + $0x1e8] sm:$0xf]
      %v2038 = vld [vmem:[%s8 + $0x1ec] sm:$0xf]
      %v2039 = vld [vmem:[%s8 + $0x1f0] sm:$0xf]
      %v2040 = vld [vmem:[%s8 + $0x1f4] sm:$0xf]
      %v2041 = vld [vmem:[%s8 + $0x1f8] sm:$0xf]
      %v2042 = vld [vmem:[%s8 + $0x1fc] sm:$0xf]
      %v2043 = vld [vmem:[%s8 + $0x200] sm:$0xf]
      %v2044 = vld [vmem:[%s8 + $0x204] sm:$0xf]
      %v2045 = vld [vmem:[%s8 + $0x208] sm:$0xf]
      %v2046 = vld [vmem:[%s8 + $0x20c] sm:$0xf]
      %v2047 = vld [vmem:[%s8 + $0x210] sm:$0xf]
      %v2048 = vld [vmem:[%s8 + $0x214] sm:$0xf]
      %v2049 = vld [vmem:[%s8 + $0x218] sm:$0xf]
      %v2050 = vld [vmem:[%s8 + $0x21c] sm:$0xf]
      %v2051 = vld [vmem:[%s8 + $0x220] sm:$0xf]
      %v2052 = vld [vmem:[%s8 + $0x224] sm:$0xf]
      %v2053 = vld [vmem:[%s8 + $0x228] sm:$0xf]
      %v2054 = vld [vmem:[%s8 + $0x22c] sm:$0xf]
      %v2055 = vld [vmem:[%s8 + $0x230] sm:$0xf]
      %v2056 = vld [vmem:[%s8 + $0x234] sm:$0xf]
      %v2057 = vld [vmem:[%s8 + $0x238] sm:$0xf]
      %v2058 = vld [vmem:[%s8 + $0x23c] sm:$0xf]
      %v2203 = vunpack.c.l.b16 %v1915
      %v2204 = vunpack.c.l.b16 %v1916
      %v2205 = vunpack.c.l.b16 %v1917
      %v2206 = vunpack.c.l.b16 %v1918
      %v2207 = vunpack.c.l.b16 %v1919
      %v2208 = vunpack.c.l.b16 %v1920
      %v2209 = vunpack.c.l.b16 %v1921
      %v2210 = vunpack.c.l.b16 %v1922
      %v2211 = vunpack.c.l.b16 %v1923
      %v2212 = vunpack.c.l.b16 %v1924
      %v2213 = vunpack.c.l.b16 %v1925
      %v2214 = vunpack.c.l.b16 %v1926
      %v2215 = vunpack.c.l.b16 %v1927
      %v2216 = vunpack.c.l.b16 %v1928
      %v2217 = vunpack.c.l.b16 %v1929
      %v2218 = vunpack.c.l.b16 %v1930
      %v2219 = vunpack.c.l.b16 %v1931
      %v2220 = vunpack.c.l.b16 %v1932
      %v2221 = vunpack.c.l.b16 %v1933
      %v2222 = vunpack.c.l.b16 %v1934
      %v2223 = vunpack.c.l.b16 %v1935
      %v2224 = vunpack.c.l.b16 %v1936
      %v2225 = vunpack.c.l.b16 %v1937
      %v2226 = vunpack.c.l.b16 %v1938
      %v2227 = vunpack.c.l.b16 %v1939
      %v2228 = vunpack.c.l.b16 %v1940
      %v2229 = vunpack.c.l.b16 %v1941
      %v2230 = vunpack.c.l.b16 %v1942
      %v2231 = vunpack.c.l.b16 %v1943
      %v2232 = vunpack.c.l.b16 %v1944
      %v2233 = vunpack.c.l.b16 %v1945
      %v2234 = vunpack.c.l.b16 %v1946
      %v2235 = vunpack.c.l.b16 %v1947
      %v2236 = vunpack.c.l.b16 %v1948
      %v2237 = vunpack.c.l.b16 %v1949
      %v2238 = vunpack.c.l.b16 %v1950
      %v2239 = vunpack.c.l.b16 %v1951
      %v2240 = vunpack.c.l.b16 %v1952
      %v2241 = vunpack.c.l.b16 %v1953
      %v2242 = vunpack.c.l.b16 %v1954
      %v2243 = vunpack.c.l.b16 %v1955
      %v2244 = vunpack.c.l.b16 %v1956
      %v2245 = vunpack.c.l.b16 %v1957
      %v2246 = vunpack.c.l.b16 %v1958
      %v2247 = vunpack.c.l.b16 %v1959
      %v2248 = vunpack.c.l.b16 %v1960
      %v2249 = vunpack.c.l.b16 %v1961
      %v2250 = vunpack.c.l.b16 %v1962
      %v2251 = vunpack.c.l.b16 %v1963
      %v2252 = vunpack.c.l.b16 %v1964
      %v2253 = vunpack.c.l.b16 %v1965
      %v2254 = vunpack.c.l.b16 %v1966
      %v2255 = vunpack.c.l.b16 %v1967
      %v2256 = vunpack.c.l.b16 %v1968
      %v2257 = vunpack.c.l.b16 %v1969
      %v2258 = vunpack.c.l.b16 %v1970
      %v2259 = vunpack.c.l.b16 %v1971
      %v2260 = vunpack.c.l.b16 %v1972
      %v2261 = vunpack.c.l.b16 %v1973
      %v2262 = vunpack.c.l.b16 %v1974
      %v2263 = vunpack.c.l.b16 %v1975
      %v2264 = vunpack.c.l.b16 %v1976
      %v2265 = vunpack.c.l.b16 %v1977
      %v2266 = vunpack.c.l.b16 %v1978
      %v2267 = vunpack.c.l.b16 %v1979
      %v2268 = vunpack.c.l.b16 %v1980
      %v2269 = vunpack.c.l.b16 %v1981
      %v2270 = vunpack.c.l.b16 %v1982
      %v2271 = vunpack.c.l.b16 %v1983
      %v2272 = vunpack.c.l.b16 %v1984
      %v2273 = vunpack.c.l.b16 %v1985
      %v2274 = vunpack.c.l.b16 %v1986
      %v2275 = vunpack.c.l.b16 %v1987
      %v2276 = vunpack.c.l.b16 %v1988
      %v2277 = vunpack.c.l.b16 %v1989
      %v2278 = vunpack.c.l.b16 %v1990
      %v2279 = vunpack.c.l.b16 %v1991
      %v2280 = vunpack.c.l.b16 %v1992
      %v2281 = vunpack.c.l.b16 %v1993
      %v2282 = vunpack.c.l.b16 %v1994
      %v2283 = vunpack.c.l.b16 %v1995
      %v2284 = vunpack.c.l.b16 %v1996
      %v2285 = vunpack.c.l.b16 %v1997
      %v2286 = vunpack.c.l.b16 %v1998
      %v2287 = vunpack.c.l.b16 %v1999
      %v2288 = vunpack.c.l.b16 %v2000
      %v2289 = vunpack.c.l.b16 %v2001
      %v2290 = vunpack.c.l.b16 %v2002
      %v2291 = vunpack.c.l.b16 %v2003
      %v2292 = vunpack.c.l.b16 %v2004
      %v2293 = vunpack.c.l.b16 %v2005
      %v2294 = vunpack.c.l.b16 %v2006
      %v2295 = vunpack.c.l.b16 %v2007
      %v2296 = vunpack.c.l.b16 %v2008
      %v2297 = vunpack.c.l.b16 %v2009
      %v2298 = vunpack.c.l.b16 %v2010
      %v2299 = vunpack.c.l.b16 %v2011
      %v2300 = vunpack.c.l.b16 %v2012
      %v2301 = vunpack.c.l.b16 %v2013
      %v2302 = vunpack.c.l.b16 %v2014
      %v2303 = vunpack.c.l.b16 %v2015
      %v2304 = vunpack.c.l.b16 %v2016
      %v2305 = vunpack.c.l.b16 %v2017
      %v2306 = vunpack.c.l.b16 %v2018
      %v2307 = vunpack.c.l.b16 %v2019
      %v2308 = vunpack.c.l.b16 %v2020
      %v2309 = vunpack.c.l.b16 %v2021
      %v2310 = vunpack.c.l.b16 %v2022
      %v2311 = vunpack.c.l.b16 %v2023
      %v2312 = vunpack.c.l.b16 %v2024
      %v2313 = vunpack.c.l.b16 %v2025
      %v2314 = vunpack.c.l.b16 %v2026
      %v2315 = vunpack.c.l.b16 %v2027
      %v2316 = vunpack.c.l.b16 %v2028
      %v2317 = vunpack.c.l.b16 %v2029
      %v2318 = vunpack.c.l.b16 %v2030
      %v2319 = vunpack.c.l.b16 %v2031
      %v2320 = vunpack.c.l.b16 %v2032
      %v2321 = vunpack.c.l.b16 %v2033
      %v2322 = vunpack.c.l.b16 %v2034
      %v2323 = vunpack.c.l.b16 %v2035
      %v2324 = vunpack.c.l.b16 %v2036
      %v2325 = vunpack.c.l.b16 %v2037
      %v2326 = vunpack.c.l.b16 %v2038
      %v2327 = vunpack.c.l.b16 %v2039
      %v2328 = vunpack.c.l.b16 %v2040
      %v2329 = vunpack.c.l.b16 %v2041
      %v2330 = vunpack.c.l.b16 %v2042
      %v2331 = vunpack.c.l.b16 %v2043
      %v2332 = vunpack.c.l.b16 %v2044
      %v2333 = vunpack.c.l.b16 %v2045
      %v2334 = vunpack.c.l.b16 %v2046
      %v2335 = vunpack.c.l.b16 %v2047
      %v2336 = vunpack.c.l.b16 %v2048
      %v2337 = vunpack.c.l.b16 %v2049
      %v2338 = vunpack.c.l.b16 %v2050
      %v2339 = vunpack.c.l.b16 %v2051
      %v2340 = vunpack.c.l.b16 %v2052
      %v2341 = vunpack.c.l.b16 %v2053
      %v2342 = vunpack.c.l.b16 %v2054
      %v2343 = vunpack.c.l.b16 %v2055
      %v2344 = vunpack.c.l.b16 %v2056
      %v2345 = vunpack.c.l.b16 %v2057
      %v2346 = vunpack.c.l.b16 %v2058
      %v2347 = vpack.c.b16 %v2204, %v2203
      %v2348 = vpack.c.b16 %v2206, %v2205
      %v2349 = vpack.c.b16 %v2208, %v2207
      %v2350 = vpack.c.b16 %v2210, %v2209
      %v2351 = vpack.c.b16 %v2212, %v2211
      %v2352 = vpack.c.b16 %v2214, %v2213
      %v2353 = vpack.c.b16 %v2216, %v2215
      %v2354 = vpack.c.b16 %v2218, %v2217
      %v2355 = vpack.c.b16 %v2220, %v2219
      %v2356 = vpack.c.b16 %v2222, %v2221
      %v2357 = vpack.c.b16 %v2224, %v2223
      %v2358 = vpack.c.b16 %v2226, %v2225
      %v2359 = vpack.c.b16 %v2228, %v2227
      %v2360 = vpack.c.b16 %v2230, %v2229
      %v2361 = vpack.c.b16 %v2232, %v2231
      %v2362 = vpack.c.b16 %v2234, %v2233
      %v2363 = vpack.c.b16 %v2236, %v2235
      %v2364 = vpack.c.b16 %v2238, %v2237
      %v2365 = vpack.c.b16 %v2240, %v2239
      %v2366 = vpack.c.b16 %v2242, %v2241
      %v2367 = vpack.c.b16 %v2244, %v2243
      %v2368 = vpack.c.b16 %v2246, %v2245
      %v2369 = vpack.c.b16 %v2248, %v2247
      %v2370 = vpack.c.b16 %v2250, %v2249
      %v2371 = vpack.c.b16 %v2252, %v2251
      %v2372 = vpack.c.b16 %v2254, %v2253
      %v2373 = vpack.c.b16 %v2256, %v2255
      %v2374 = vpack.c.b16 %v2258, %v2257
      %v2375 = vpack.c.b16 %v2260, %v2259
      %v2376 = vpack.c.b16 %v2262, %v2261
      %v2377 = vpack.c.b16 %v2264, %v2263
      %v2378 = vpack.c.b16 %v2266, %v2265
      %v2379 = vpack.c.b16 %v2268, %v2267
      %v2380 = vpack.c.b16 %v2270, %v2269
      %v2381 = vpack.c.b16 %v2272, %v2271
      %v2382 = vpack.c.b16 %v2274, %v2273
      %v2383 = vpack.c.b16 %v2276, %v2275
      %v2384 = vpack.c.b16 %v2278, %v2277
      %v2385 = vpack.c.b16 %v2280, %v2279
      %v2386 = vpack.c.b16 %v2282, %v2281
      %v2387 = vpack.c.b16 %v2284, %v2283
      %v2388 = vpack.c.b16 %v2286, %v2285
      %v2389 = vpack.c.b16 %v2288, %v2287
      %v2390 = vpack.c.b16 %v2290, %v2289
      %v2391 = vpack.c.b16 %v2292, %v2291
      %v2392 = vpack.c.b16 %v2294, %v2293
      %v2393 = vpack.c.b16 %v2296, %v2295
      %v2394 = vpack.c.b16 %v2298, %v2297
      %v2395 = vpack.c.b16 %v2300, %v2299
      %v2396 = vpack.c.b16 %v2302, %v2301
      %v2397 = vpack.c.b16 %v2304, %v2303
      %v2398 = vpack.c.b16 %v2306, %v2305
      %v2399 = vpack.c.b16 %v2308, %v2307
      %v2400 = vpack.c.b16 %v2310, %v2309
      %v2401 = vpack.c.b16 %v2312, %v2311
      %v2402 = vpack.c.b16 %v2314, %v2313
      %v2403 = vpack.c.b16 %v2316, %v2315
      %v2404 = vpack.c.b16 %v2318, %v2317
      %v2405 = vpack.c.b16 %v2320, %v2319
      %v2406 = vpack.c.b16 %v2322, %v2321
      %v2407 = vpack.c.b16 %v2324, %v2323
      %v2408 = vpack.c.b16 %v2326, %v2325
      %v2409 = vpack.c.b16 %v2328, %v2327
      %v2410 = vpack.c.b16 %v2330, %v2329
      %v2411 = vpack.c.b16 %v2332, %v2331
      %v2412 = vpack.c.b16 %v2334, %v2333
      %v2413 = vpack.c.b16 %v2336, %v2335
      %v2414 = vpack.c.b16 %v2338, %v2337
      %v2415 = vpack.c.b16 %v2340, %v2339
      %v2416 = vpack.c.b16 %v2342, %v2341
      %v2417 = vpack.c.b16 %v2344, %v2343
      %v2418 = vpack.c.b16 %v2346, %v2345
      %2491 = vmatpush.bf16.msra.mxu0 %v2354
      %2492 = vmatpush.bf16.msra.mxu0 %v2353
      %2493 = vmatpush.bf16.msra.mxu0 %v2352
      %2494 = vmatpush.bf16.msra.mxu0 %v2351
      %2495 = vmatpush.bf16.msra.mxu0 %v2350
      %2496 = vmatpush.bf16.msra.mxu0 %v2349
      %2497 = vmatpush.bf16.msra.mxu0 %v2348
      %2498 = vmatpush.bf16.msra.mxu0 %v2347
      %2499 = vmatmul.bf16.gmra.mxu0 %v1855
      %v2500 = vpop.f32.mrf.mxu0
      %v2501 = vadd.f32 0.0, %v2500
      %v2502 = vpop.f32.mrf.mxu0
      %v2503 = vadd.f32 0.0, %v2502
      %2504 = vmatmul.bf16.gmra.mxu0 %v1856
      %v2505 = vpop.f32.mrf.mxu0
      %v2506 = vadd.f32 0.0, %v2505
      %v2507 = vpop.f32.mrf.mxu0
      %v2508 = vadd.f32 0.0, %v2507
      %2509 = vmatmul.bf16.gmra.mxu0 %v1857
      %v2510 = vpop.f32.mrf.mxu0
      %v2511 = vadd.f32 0.0, %v2510
      %v2512 = vpop.f32.mrf.mxu0
      %v2513 = vadd.f32 0.0, %v2512
      %2514 = vmatmul.bf16.gmra.mxu0 %v1858
      %v2515 = vpop.f32.mrf.mxu0
      %v2516 = vadd.f32 0.0, %v2515
      %v2517 = vpop.f32.mrf.mxu0
      %v2518 = vadd.f32 0.0, %v2517
      %2519 = vmatmul.bf16.gmra.mxu0 %v1859
      %v2520 = vpop.f32.mrf.mxu0
      %v2521 = vadd.f32 0.0, %v2520
      %v2522 = vpop.f32.mrf.mxu0
      %v2523 = vadd.f32 0.0, %v2522
      %2524 = vmatmul.bf16.gmra.mxu0 %v1860
      %v2525 = vpop.f32.mrf.mxu0
      %v2526 = vadd.f32 0.0, %v2525
      %v2527 = vpop.f32.mrf.mxu0
      %v2528 = vadd.f32 0.0, %v2527
      %2529 = vmatmul.bf16.gmra.mxu0 %v1861
      %v2530 = vpop.f32.mrf.mxu0
      %v2531 = vadd.f32 0.0, %v2530
      %v2532 = vpop.f32.mrf.mxu0
      %v2533 = vadd.f32 0.0, %v2532
      %2534 = vmatmul.bf16.gmra.mxu0 %v1862
      %v2535 = vpop.f32.mrf.mxu0
      %v2536 = vadd.f32 0.0, %v2535
      %v2537 = vpop.f32.mrf.mxu0
      %v2538 = vadd.f32 0.0, %v2537
      %2539 = vdwg.mxu0
      %2540 = vmatpush.bf16.msra.mxu0 %v2362
      %2541 = vmatpush.bf16.msra.mxu0 %v2361
      %2542 = vmatpush.bf16.msra.mxu0 %v2360
      %2543 = vmatpush.bf16.msra.mxu0 %v2359
      %2544 = vmatpush.bf16.msra.mxu0 %v2358
      %2545 = vmatpush.bf16.msra.mxu0 %v2357
      %2546 = vmatpush.bf16.msra.mxu0 %v2356
      %2547 = vmatpush.bf16.msra.mxu0 %v2355
      %2548 = vmatmul.bf16.gmra.mxu0 %v1765
      %v2549 = vpop.f32.mrf.mxu0
      %v2550 = vadd.f32 %v2501, %v2549
      %v2551 = vpop.f32.mrf.mxu0
      %v2552 = vadd.f32 %v2503, %v2551
      %2553 = vmatmul.bf16.gmra.mxu0 %v1766
      %v2554 = vpop.f32.mrf.mxu0
      %v2555 = vadd.f32 %v2506, %v2554
      %v2556 = vpop.f32.mrf.mxu0
      %v2557 = vadd.f32 %v2508, %v2556
      %2558 = vmatmul.bf16.gmra.mxu0 %v1767
      %v2559 = vpop.f32.mrf.mxu0
      %v2560 = vadd.f32 %v2511, %v2559
      %v2561 = vpop.f32.mrf.mxu0
      %v2562 = vadd.f32 %v2513, %v2561
      %2563 = vmatmul.bf16.gmra.mxu0 %v1768
      %v2564 = vpop.f32.mrf.mxu0
      %v2565 = vadd.f32 %v2516, %v2564
      %v2566 = vpop.f32.mrf.mxu0
      %v2567 = vadd.f32 %v2518, %v2566
      %2568 = vmatmul.bf16.gmra.mxu0 %v1769
      %v2569 = vpop.f32.mrf.mxu0
      %v2570 = vadd.f32 %v2521, %v2569
      %v2571 = vpop.f32.mrf.mxu0
      %v2572 = vadd.f32 %v2523, %v2571
      %2573 = vmatmul.bf16.gmra.mxu0 %v1770
      %v2574 = vpop.f32.mrf.mxu0
      %v2575 = vadd.f32 %v2526, %v2574
      %v2576 = vpop.f32.mrf.mxu0
      %v2577 = vadd.f32 %v2528, %v2576
      %2578 = vmatmul.bf16.gmra.mxu0 %v1771
      %v2579 = vpop.f32.mrf.mxu0
      %v2580 = vadd.f32 %v2531, %v2579
      %v2581 = vpop.f32.mrf.mxu0
      %v2582 = vadd.f32 %v2533, %v2581
      %2583 = vmatmul.bf16.gmra.mxu0 %v1772
      %v2584 = vpop.f32.mrf.mxu0
      %v2585 = vadd.f32 %v2536, %v2584
      %v2586 = vpop.f32.mrf.mxu0
      %v2587 = vadd.f32 %v2538, %v2586
      %2588 = vdwg.mxu0
      %2589 = vmatpush.bf16.msra.mxu0 %v2370
      %2590 = vmatpush.bf16.msra.mxu0 %v2369
      %2591 = vmatpush.bf16.msra.mxu0 %v2368
      %2592 = vmatpush.bf16.msra.mxu0 %v2367
      %2593 = vmatpush.bf16.msra.mxu0 %v2366
      %2594 = vmatpush.bf16.msra.mxu0 %v2365
      %2595 = vmatpush.bf16.msra.mxu0 %v2364
      %2596 = vmatpush.bf16.msra.mxu0 %v2363
      %2597 = vmatmul.bf16.gmra.mxu0 %v1895
      %v2598 = vpop.f32.mrf.mxu0
      %v2599 = vadd.f32 %v2550, %v2598
      %v2600 = vpop.f32.mrf.mxu0
      %v2601 = vadd.f32 %v2552, %v2600
      %2602 = vmatmul.bf16.gmra.mxu0 %v1896
      %v2603 = vpop.f32.mrf.mxu0
      %v2604 = vadd.f32 %v2555, %v2603
      %v2605 = vpop.f32.mrf.mxu0
      %v2606 = vadd.f32 %v2557, %v2605
      %2607 = vmatmul.bf16.gmra.mxu0 %v1897
      %v2608 = vpop.f32.mrf.mxu0
      %v2609 = vadd.f32 %v2560, %v2608
      %v2610 = vpop.f32.mrf.mxu0
      %v2611 = vadd.f32 %v2562, %v2610
      %2612 = vmatmul.bf16.gmra.mxu0 %v1898
      %v2613 = vpop.f32.mrf.mxu0
      %v2614 = vadd.f32 %v2565, %v2613
      %v2615 = vpop.f32.mrf.mxu0
      %v2616 = vadd.f32 %v2567, %v2615
      %2617 = vmatmul.bf16.gmra.mxu0 %v1899
      %v2618 = vpop.f32.mrf.mxu0
      %v2619 = vadd.f32 %v2570, %v2618
      %v2620 = vpop.f32.mrf.mxu0
      %v2621 = vadd.f32 %v2572, %v2620
      %2622 = vmatmul.bf16.gmra.mxu0 %v1900
      %v2623 = vpop.f32.mrf.mxu0
      %v2624 = vadd.f32 %v2575, %v2623
      %v2625 = vpop.f32.mrf.mxu0
      %v2626 = vadd.f32 %v2577, %v2625
      %2627 = vmatmul.bf16.gmra.mxu0 %v1901
      %v2628 = vpop.f32.mrf.mxu0
      %v2629 = vadd.f32 %v2580, %v2628
      %v2630 = vpop.f32.mrf.mxu0
      %v2631 = vadd.f32 %v2582, %v2630
      %2632 = vmatmul.bf16.gmra.mxu0 %v1902
      %v2633 = vpop.f32.mrf.mxu0
      %v2634 = vadd.f32 %v2585, %v2633
      %v2635 = vpop.f32.mrf.mxu0
      %v2636 = vadd.f32 %v2587, %v2635
      %2637 = vdwg.mxu0
      %2638 = vmatpush.bf16.msra.mxu0 %v2378
      %2639 = vmatpush.bf16.msra.mxu0 %v2377
      %2640 = vmatpush.bf16.msra.mxu0 %v2376
      %2641 = vmatpush.bf16.msra.mxu0 %v2375
      %2642 = vmatpush.bf16.msra.mxu0 %v2374
      %2643 = vmatpush.bf16.msra.mxu0 %v2373
      %2644 = vmatpush.bf16.msra.mxu0 %v2372
      %2645 = vmatpush.bf16.msra.mxu0 %v2371
      %2646 = vmatmul.bf16.gmra.mxu0 %v1856
      %v2647 = vpop.f32.mrf.mxu0
      %v2648 = vadd.f32 %v2599, %v2647
      %v2649 = vpop.f32.mrf.mxu0
      %v2650 = vadd.f32 %v2601, %v2649
      %2651 = vmatmul.bf16.gmra.mxu0 %v1857
      %v2652 = vpop.f32.mrf.mxu0
      %v2653 = vadd.f32 %v2604, %v2652
      %v2654 = vpop.f32.mrf.mxu0
      %v2655 = vadd.f32 %v2606, %v2654
      %2656 = vmatmul.bf16.gmra.mxu0 %v1858
      %v2657 = vpop.f32.mrf.mxu0
      %v2658 = vadd.f32 %v2609, %v2657
      %v2659 = vpop.f32.mrf.mxu0
      %v2660 = vadd.f32 %v2611, %v2659
      %2661 = vmatmul.bf16.gmra.mxu0 %v1859
      %v2662 = vpop.f32.mrf.mxu0
      %v2663 = vadd.f32 %v2614, %v2662
      %v2664 = vpop.f32.mrf.mxu0
      %v2665 = vadd.f32 %v2616, %v2664
      %2666 = vmatmul.bf16.gmra.mxu0 %v1860
      %v2667 = vpop.f32.mrf.mxu0
      %v2668 = vadd.f32 %v2619, %v2667
      %v2669 = vpop.f32.mrf.mxu0
      %v2670 = vadd.f32 %v2621, %v2669
      %2671 = vmatmul.bf16.gmra.mxu0 %v1861
      %v2672 = vpop.f32.mrf.mxu0
      %v2673 = vadd.f32 %v2624, %v2672
      %v2674 = vpop.f32.mrf.mxu0
      %v2675 = vadd.f32 %v2626, %v2674
      %2676 = vmatmul.bf16.gmra.mxu0 %v1862
      %v2677 = vpop.f32.mrf.mxu0
      %v2678 = vadd.f32 %v2629, %v2677
      %v2679 = vpop.f32.mrf.mxu0
      %v2680 = vadd.f32 %v2631, %v2679
      %2681 = vmatmul.bf16.gmra.mxu0 %v1863
      %v2682 = vpop.f32.mrf.mxu0
      %v2683 = vadd.f32 %v2634, %v2682
      %v2684 = vpop.f32.mrf.mxu0
      %v2685 = vadd.f32 %v2636, %v2684
      %2686 = vdwg.mxu0
      %2687 = vmatpush.bf16.msra.mxu0 %v2386
      %2688 = vmatpush.bf16.msra.mxu0 %v2385
      %2689 = vmatpush.bf16.msra.mxu0 %v2384
      %2690 = vmatpush.bf16.msra.mxu0 %v2383
      %2691 = vmatpush.bf16.msra.mxu0 %v2382
      %2692 = vmatpush.bf16.msra.mxu0 %v2381
      %2693 = vmatpush.bf16.msra.mxu0 %v2380
      %2694 = vmatpush.bf16.msra.mxu0 %v2379
      %2695 = vmatmul.bf16.gmra.mxu0 %v1766
      %v2696 = vpop.f32.mrf.mxu0
      %v2697 = vadd.f32 %v2648, %v2696
      %v2698 = vpop.f32.mrf.mxu0
      %v2699 = vadd.f32 %v2650, %v2698
      %2700 = vmatmul.bf16.gmra.mxu0 %v1767
      %v2701 = vpop.f32.mrf.mxu0
      %v2702 = vadd.f32 %v2653, %v2701
      %v2703 = vpop.f32.mrf.mxu0
      %v2704 = vadd.f32 %v2655, %v2703
      %2705 = vmatmul.bf16.gmra.mxu0 %v1768
      %v2706 = vpop.f32.mrf.mxu0
      %v2707 = vadd.f32 %v2658, %v2706
      %v2708 = vpop.f32.mrf.mxu0
      %v2709 = vadd.f32 %v2660, %v2708
      %2710 = vmatmul.bf16.gmra.mxu0 %v1769
      %v2711 = vpop.f32.mrf.mxu0
      %v2712 = vadd.f32 %v2663, %v2711
      %v2713 = vpop.f32.mrf.mxu0
      %v2714 = vadd.f32 %v2665, %v2713
      %2715 = vmatmul.bf16.gmra.mxu0 %v1770
      %v2716 = vpop.f32.mrf.mxu0
      %v2717 = vadd.f32 %v2668, %v2716
      %v2718 = vpop.f32.mrf.mxu0
      %v2719 = vadd.f32 %v2670, %v2718
      %2720 = vmatmul.bf16.gmra.mxu0 %v1771
      %v2721 = vpop.f32.mrf.mxu0
      %v2722 = vadd.f32 %v2673, %v2721
      %v2723 = vpop.f32.mrf.mxu0
      %v2724 = vadd.f32 %v2675, %v2723
      %2725 = vmatmul.bf16.gmra.mxu0 %v1772
      %v2726 = vpop.f32.mrf.mxu0
      %v2727 = vadd.f32 %v2678, %v2726
      %v2728 = vpop.f32.mrf.mxu0
      %v2729 = vadd.f32 %v2680, %v2728
      %2730 = vmatmul.bf16.gmra.mxu0 %v1773
      %v2731 = vpop.f32.mrf.mxu0
      %v2732 = vadd.f32 %v2683, %v2731
      %v2733 = vpop.f32.mrf.mxu0
      %v2734 = vadd.f32 %v2685, %v2733
      %2735 = vdwg.mxu0
      %2736 = vmatpush.bf16.msra.mxu0 %v2394
      %2737 = vmatpush.bf16.msra.mxu0 %v2393
      %2738 = vmatpush.bf16.msra.mxu0 %v2392
      %2739 = vmatpush.bf16.msra.mxu0 %v2391
      %2740 = vmatpush.bf16.msra.mxu0 %v2390
      %2741 = vmatpush.bf16.msra.mxu0 %v2389
      %2742 = vmatpush.bf16.msra.mxu0 %v2388
      %2743 = vmatpush.bf16.msra.mxu0 %v2387
      %2744 = vmatmul.bf16.gmra.mxu0 %v1896
      %v2745 = vpop.f32.mrf.mxu0
      %v2746 = vadd.f32 %v2697, %v2745
      %v2747 = vpop.f32.mrf.mxu0
      %v2748 = vadd.f32 %v2699, %v2747
      %2749 = vmatmul.bf16.gmra.mxu0 %v1897
      %v2750 = vpop.f32.mrf.mxu0
      %v2751 = vadd.f32 %v2702, %v2750
      %v2752 = vpop.f32.mrf.mxu0
      %v2753 = vadd.f32 %v2704, %v2752
      %2754 = vmatmul.bf16.gmra.mxu0 %v1898
      %v2755 = vpop.f32.mrf.mxu0
      %v2756 = vadd.f32 %v2707, %v2755
      %v2757 = vpop.f32.mrf.mxu0
      %v2758 = vadd.f32 %v2709, %v2757
      %2759 = vmatmul.bf16.gmra.mxu0 %v1899
      %v2760 = vpop.f32.mrf.mxu0
      %v2761 = vadd.f32 %v2712, %v2760
      %v2762 = vpop.f32.mrf.mxu0
      %v2763 = vadd.f32 %v2714, %v2762
      %2764 = vmatmul.bf16.gmra.mxu0 %v1900
      %v2765 = vpop.f32.mrf.mxu0
      %v2766 = vadd.f32 %v2717, %v2765
      %v2767 = vpop.f32.mrf.mxu0
      %v2768 = vadd.f32 %v2719, %v2767
      %2769 = vmatmul.bf16.gmra.mxu0 %v1901
      %v2770 = vpop.f32.mrf.mxu0
      %v2771 = vadd.f32 %v2722, %v2770
      %v2772 = vpop.f32.mrf.mxu0
      %v2773 = vadd.f32 %v2724, %v2772
      %2774 = vmatmul.bf16.gmra.mxu0 %v1902
      %v2775 = vpop.f32.mrf.mxu0
      %v2776 = vadd.f32 %v2727, %v2775
      %v2777 = vpop.f32.mrf.mxu0
      %v2778 = vadd.f32 %v2729, %v2777
      %2779 = vmatmul.bf16.gmra.mxu0 %v1903
      %v2780 = vpop.f32.mrf.mxu0
      %v2781 = vadd.f32 %v2732, %v2780
      %v2782 = vpop.f32.mrf.mxu0
      %v2783 = vadd.f32 %v2734, %v2782
      %2784 = vdwg.mxu0
      %2785 = vmatpush.bf16.msra.mxu0 %v2402
      %2786 = vmatpush.bf16.msra.mxu0 %v2401
      %2787 = vmatpush.bf16.msra.mxu0 %v2400
      %2788 = vmatpush.bf16.msra.mxu0 %v2399
      %2789 = vmatpush.bf16.msra.mxu0 %v2398
      %2790 = vmatpush.bf16.msra.mxu0 %v2397
      %2791 = vmatpush.bf16.msra.mxu0 %v2396
      %2792 = vmatpush.bf16.msra.mxu0 %v2395
      %2793 = vmatmul.bf16.gmra.mxu0 %v1857
      %v2794 = vpop.f32.mrf.mxu0
      %v2795 = vadd.f32 %v2746, %v2794
      %v2796 = vpop.f32.mrf.mxu0
      %v2797 = vadd.f32 %v2748, %v2796
      %2798 = vmatmul.bf16.gmra.mxu0 %v1858
      %v2799 = vpop.f32.mrf.mxu0
      %v2800 = vadd.f32 %v2751, %v2799
      %v2801 = vpop.f32.mrf.mxu0
      %v2802 = vadd.f32 %v2753, %v2801
      %2803 = vmatmul.bf16.gmra.mxu0 %v1859
      %v2804 = vpop.f32.mrf.mxu0
      %v2805 = vadd.f32 %v2756, %v2804
      %v2806 = vpop.f32.mrf.mxu0
      %v2807 = vadd.f32 %v2758, %v2806
      %2808 = vmatmul.bf16.gmra.mxu0 %v1860
      %v2809 = vpop.f32.mrf.mxu0
      %v2810 = vadd.f32 %v2761, %v2809
      %v2811 = vpop.f32.mrf.mxu0
      %v2812 = vadd.f32 %v2763, %v2811
      %2813 = vmatmul.bf16.gmra.mxu0 %v1861
      %v2814 = vpop.f32.mrf.mxu0
      %v2815 = vadd.f32 %v2766, %v2814
      %v2816 = vpop.f32.mrf.mxu0
      %v2817 = vadd.f32 %v2768, %v2816
      %2818 = vmatmul.bf16.gmra.mxu0 %v1862
      %v2819 = vpop.f32.mrf.mxu0
      %v2820 = vadd.f32 %v2771, %v2819
      %v2821 = vpop.f32.mrf.mxu0
      %v2822 = vadd.f32 %v2773, %v2821
      %2823 = vmatmul.bf16.gmra.mxu0 %v1863
      %v2824 = vpop.f32.mrf.mxu0
      %v2825 = vadd.f32 %v2776, %v2824
      %v2826 = vpop.f32.mrf.mxu0
      %v2827 = vadd.f32 %v2778, %v2826
      %2828 = vmatmul.bf16.gmra.mxu0 %v1864
      %v2829 = vpop.f32.mrf.mxu0
      %v2830 = vadd.f32 %v2781, %v2829
      %v2831 = vpop.f32.mrf.mxu0
      %v2832 = vadd.f32 %v2783, %v2831
      %2833 = vdwg.mxu0
      %2834 = vmatpush.bf16.msra.mxu0 %v2410
      %2835 = vmatpush.bf16.msra.mxu0 %v2409
      %2836 = vmatpush.bf16.msra.mxu0 %v2408
      %2837 = vmatpush.bf16.msra.mxu0 %v2407
      %2838 = vmatpush.bf16.msra.mxu0 %v2406
      %2839 = vmatpush.bf16.msra.mxu0 %v2405
      %2840 = vmatpush.bf16.msra.mxu0 %v2404
      %2841 = vmatpush.bf16.msra.mxu0 %v2403
      %2842 = vmatmul.bf16.gmra.mxu0 %v1767
      %v2843 = vpop.f32.mrf.mxu0
      %v2844 = vadd.f32 %v2795, %v2843
      %v2845 = vpop.f32.mrf.mxu0
      %v2846 = vadd.f32 %v2797, %v2845
      %2847 = vmatmul.bf16.gmra.mxu0 %v1768
      %v2848 = vpop.f32.mrf.mxu0
      %v2849 = vadd.f32 %v2800, %v2848
      %v2850 = vpop.f32.mrf.mxu0
      %v2851 = vadd.f32 %v2802, %v2850
      %2852 = vmatmul.bf16.gmra.mxu0 %v1769
      %v2853 = vpop.f32.mrf.mxu0
      %v2854 = vadd.f32 %v2805, %v2853
      %v2855 = vpop.f32.mrf.mxu0
      %v2856 = vadd.f32 %v2807, %v2855
      %2857 = vmatmul.bf16.gmra.mxu0 %v1770
      %v2858 = vpop.f32.mrf.mxu0
      %v2859 = vadd.f32 %v2810, %v2858
      %v2860 = vpop.f32.mrf.mxu0
      %v2861 = vadd.f32 %v2812, %v2860
      %2862 = vmatmul.bf16.gmra.mxu0 %v1771
      %v2863 = vpop.f32.mrf.mxu0
      %v2864 = vadd.f32 %v2815, %v2863
      %v2865 = vpop.f32.mrf.mxu0
      %v2866 = vadd.f32 %v2817, %v2865
      %2867 = vmatmul.bf16.gmra.mxu0 %v1772
      %v2868 = vpop.f32.mrf.mxu0
      %v2869 = vadd.f32 %v2820, %v2868
      %v2870 = vpop.f32.mrf.mxu0
      %v2871 = vadd.f32 %v2822, %v2870
      %2872 = vmatmul.bf16.gmra.mxu0 %v1773
      %v2873 = vpop.f32.mrf.mxu0
      %v2874 = vadd.f32 %v2825, %v2873
      %v2875 = vpop.f32.mrf.mxu0
      %v2876 = vadd.f32 %v2827, %v2875
      %2877 = vmatmul.bf16.gmra.mxu0 %v1774
      %v2878 = vpop.f32.mrf.mxu0
      %v2879 = vadd.f32 %v2830, %v2878
      %v2880 = vpop.f32.mrf.mxu0
      %v2881 = vadd.f32 %v2832, %v2880
      %2882 = vdwg.mxu0
      %2883 = vmatpush.bf16.msra.mxu0 %v2418
      %2884 = vmatpush.bf16.msra.mxu0 %v2417
      %2885 = vmatpush.bf16.msra.mxu0 %v2416
      %2886 = vmatpush.bf16.msra.mxu0 %v2415
      %2887 = vmatpush.bf16.msra.mxu0 %v2414
      %2888 = vmatpush.bf16.msra.mxu0 %v2413
      %2889 = vmatpush.bf16.msra.mxu0 %v2412
      %2890 = vmatpush.bf16.msra.mxu0 %v2411
      %2891 = vmatmul.bf16.gmra.mxu0 %v1897
      %v2892 = vpop.f32.mrf.mxu0
      %v2893 = vadd.f32 %v2844, %v2892
      %v2894 = vpop.f32.mrf.mxu0
      %v2895 = vadd.f32 %v2846, %v2894
      %2896 = vmatmul.bf16.gmra.mxu0 %v1898
      %v2897 = vpop.f32.mrf.mxu0
      %v2898 = vadd.f32 %v2849, %v2897
      %v2899 = vpop.f32.mrf.mxu0
      %v2900 = vadd.f32 %v2851, %v2899
      %2901 = vmatmul.bf16.gmra.mxu0 %v1899
      %v2902 = vpop.f32.mrf.mxu0
      %v2903 = vadd.f32 %v2854, %v2902
      %v2904 = vpop.f32.mrf.mxu0
      %v2905 = vadd.f32 %v2856, %v2904
      %2906 = vmatmul.bf16.gmra.mxu0 %v1900
      %v2907 = vpop.f32.mrf.mxu0
      %v2908 = vadd.f32 %v2859, %v2907
      %v2909 = vpop.f32.mrf.mxu0
      %v2910 = vadd.f32 %v2861, %v2909
      %2911 = vmatmul.bf16.gmra.mxu0 %v1901
      %v2912 = vpop.f32.mrf.mxu0
      %v2913 = vadd.f32 %v2864, %v2912
      %v2914 = vpop.f32.mrf.mxu0
      %v2915 = vadd.f32 %v2866, %v2914
      %2916 = vmatmul.bf16.gmra.mxu0 %v1902
      %v2917 = vpop.f32.mrf.mxu0
      %v2918 = vadd.f32 %v2869, %v2917
      %v2919 = vpop.f32.mrf.mxu0
      %v2920 = vadd.f32 %v2871, %v2919
      %2921 = vmatmul.bf16.gmra.mxu0 %v1903
      %v2922 = vpop.f32.mrf.mxu0
      %v2923 = vadd.f32 %v2874, %v2922
      %v2924 = vpop.f32.mrf.mxu0
      %v2925 = vadd.f32 %v2876, %v2924
      %2926 = vmatmul.bf16.gmra.mxu0 %v1904
      %v2927 = vpop.f32.mrf.mxu0
      %v2928 = vadd.f32 %v2879, %v2927
      %v2929 = vpop.f32.mrf.mxu0
      %v2930 = vadd.f32 %v2881, %v2929
      %2931 = vdwg.mxu0
      %v2932 = vld [vmem:[%s9] sm:$0x1]
      %v2934 = vperm.slane %v2932, 0
      %v2936 = vmul.f32 %v2893, %v2934
      %v2937 = vmul.f32 %v2895, %v2934
      %v2938 = vmul.f32 %v2898, %v2934
      %v2939 = vmul.f32 %v2900, %v2934
      %v2940 = vmul.f32 %v2903, %v2934
      %v2941 = vmul.f32 %v2905, %v2934
      %v2942 = vmul.f32 %v2908, %v2934
      %v2943 = vmul.f32 %v2910, %v2934
      %v2944 = vmul.f32 %v2913, %v2934
      %v2945 = vmul.f32 %v2915, %v2934
      %v2946 = vmul.f32 %v2918, %v2934
      %v2947 = vmul.f32 %v2920, %v2934
      %v2948 = vmul.f32 %v2923, %v2934
      %v2949 = vmul.f32 %v2925, %v2934
      %v2950 = vmul.f32 %v2928, %v2934
      %v2951 = vmul.f32 %v2930, %v2934
      %v2952 = vld [vmem:[%s10] sm:$0x1]
      %v2954 = vperm.slane %v2952, 0
      %v2956 = vadd.f32 %v2936, %v2954
      %v2957 = vadd.f32 %v2937, %v2954
      %v2958 = vadd.f32 %v2938, %v2954
      %v2959 = vadd.f32 %v2939, %v2954
      %v2960 = vadd.f32 %v2940, %v2954
      %v2961 = vadd.f32 %v2941, %v2954
      %v2962 = vadd.f32 %v2942, %v2954
      %v2963 = vadd.f32 %v2943, %v2954
      %v2964 = vadd.f32 %v2944, %v2954
      %v2965 = vadd.f32 %v2945, %v2954
      %v2966 = vadd.f32 %v2946, %v2954
      %v2967 = vadd.f32 %v2947, %v2954
      %v2968 = vadd.f32 %v2948, %v2954
      %v2969 = vadd.f32 %v2949, %v2954
      %v2970 = vadd.f32 %v2950, %v2954
      %v2971 = vadd.f32 %v2951, %v2954
      %v2972 = vmax.f32 %v2956, 0.0
      %v2973 = vmax.f32 %v2957, 0.0
      %v2974 = vmax.f32 %v2958, 0.0
      %v2975 = vmax.f32 %v2959, 0.0
      %v2976 = vmax.f32 %v2960, 0.0
      %v2977 = vmax.f32 %v2961, 0.0
      %v2978 = vmax.f32 %v2962, 0.0
      %v2979 = vmax.f32 %v2963, 0.0
      %v2980 = vmax.f32 %v2964, 0.0
      %v2981 = vmax.f32 %v2965, 0.0
      %v2982 = vmax.f32 %v2966, 0.0
      %v2983 = vmax.f32 %v2967, 0.0
      %v2984 = vmax.f32 %v2968, 0.0
      %v2985 = vmax.f32 %v2969, 0.0
      %v2986 = vmax.f32 %v2970, 0.0
      %v2987 = vmax.f32 %v2971, 0.0
      %v2988 = vpack.c.bf16 %v2972, %v2972
      %v2989 = vpack.c.bf16 %v2973, %v2973
      %v2990 = vpack.c.bf16 %v2974, %v2974
      %v2991 = vpack.c.bf16 %v2975, %v2975
      %v2992 = vpack.c.bf16 %v2976, %v2976
      %v2993 = vpack.c.bf16 %v2977, %v2977
      %v2994 = vpack.c.bf16 %v2978, %v2978
      %v2995 = vpack.c.bf16 %v2979, %v2979
      %v2996 = vpack.c.bf16 %v2980, %v2980
      %v2997 = vpack.c.bf16 %v2981, %v2981
      %v2998 = vpack.c.bf16 %v2982, %v2982
      %v2999 = vpack.c.bf16 %v2983, %v2983
      %v3000 = vpack.c.bf16 %v2984, %v2984
      %v3001 = vpack.c.bf16 %v2985, %v2985
      %v3002 = vpack.c.bf16 %v2986, %v2986
      %v3003 = vpack.c.bf16 %v2987, %v2987
      %3004 = vst [vmem:[%s731] sm:$0xf] %v2988
      %3005 = vst [vmem:[%s731 + $0x4] sm:$0xf] %v2989
      %3006 = vst [vmem:[%s731 + $0x8] sm:$0xf] %v2990
      %3007 = vst [vmem:[%s731 + $0xc] sm:$0xf] %v2991
      %3008 = vst [vmem:[%s731 + $0x10] sm:$0xf] %v2992
      %3009 = vst [vmem:[%s731 + $0x14] sm:$0xf] %v2993
      %3010 = vst [vmem:[%s731 + $0x18] sm:$0xf] %v2994
      %3011 = vst [vmem:[%s731 + $0x1c] sm:$0xf] %v2995
      %3012 = vst [vmem:[%s731 + $0x20] sm:$0xf] %v2996
      %3013 = vst [vmem:[%s731 + $0x24] sm:$0xf] %v2997
      %3014 = vst [vmem:[%s731 + $0x28] sm:$0xf] %v2998
      %3015 = vst [vmem:[%s731 + $0x2c] sm:$0xf] %v2999
      %3016 = vst [vmem:[%s731 + $0x30] sm:$0xf] %v3000
      %3017 = vst [vmem:[%s731 + $0x34] sm:$0xf] %v3001
      %3018 = vst [vmem:[%s731 + $0x38] sm:$0xf] %v3002
      %3019 = vst [vmem:[%s731 + $0x3c] sm:$0xf] %v3003
      %p3020 = scmp.lt.s32.totalorder %s26, 1
      %s3021 = scalar_select %p3020, %s26, 1
      %p3022 = scmp.lt.s32.totalorder %s27, 1
      %s3023 = scalar_select %p3022, %s27, 1
      %s3024 = smul.addr %s3023, 16
      %s3025 = smul.addr %s3021, 32
      %s3026 = sadd.s32 %s3024, %s3025
      %s3027 = smul.addr %s3026, 4
      %s3028 = scalar_lea.vmem %s11, %s3027
      // Predicated region
      $region65: #{double_conv_forward.1} parent=63 // pred_check
        %p3029 = pneg %p368
      $region66: #{double_conv_forward.1} parent=63 // pred_check_branch
        %3031 = sbr.rel (%p3029) target = $region68
      $region67: #{double_conv_forward.1} parent=63 // pred_region
        _
      $region68: #{double_conv_forward.1} parent=63 // pred_fallthru
        _
    $region64: #{double_conv_forward.1} parent=5 // pred_fallthru
      _
    %p3032 = scmp.le.s32.totalorder 2, %s17
    // Predicated region
    $region69: #{double_conv_forward.1} parent=5 // pred_check
      %p3033 = pneg %p3032
    $region70: #{double_conv_forward.1} parent=5 // pred_check_branch
      %3035 = sbr.rel (%p3033) target = $region72
    $region71: #{double_conv_forward.1} parent=5 // pred_region
      %s3036 = ssub.s32 %s17, 2
      // Predicated region
      $region73: #{double_conv_forward.1} parent=71 // pred_check
        %p3037 = pneg %p374
      $region74: #{double_conv_forward.1} parent=71 // pred_check_branch
        %3039 = sbr.rel (%p3037) target = $region76
      $region75: #{double_conv_forward.1} parent=71 // pred_region
        %p3040 = scmp.lt.s32.totalorder %s28, 1
        %s3041 = scalar_select %p3040, %s28, 1
        %p3042 = scmp.lt.s32.totalorder %s29, 1
        %s3043 = scalar_select %p3042, %s29, 1
        %s3044 = smul.addr %s3043, 16
        %s3045 = smul.addr %s3041, 32
        %s3046 = sadd.s32 %s3044, %s3045
        %s3047 = smul.addr %s3046, 4
        %s3048 = scalar_lea.vmem %s11, %s3047
      $region76: #{double_conv_forward.1} parent=71 // pred_fallthru
        _
    $region72: #{double_conv_forward.1} parent=5 // pred_fallthru
      _
  $region6: #{double_conv_forward.1} parent=0 // loop_footer
    %s21 = sadd.s32 1, %s17
  $region7: #{double_conv_forward.1} parent=0 // loop_footer_branch
    %16 = sbr.rel target = $region3
  $region8: #{double_conv_forward.1} parent=0 // loop_exit
    _

</llo_original>
